<compile_context>
chip_gen: v7x
topology: tpu7x:2x2x1
jax: 0.10.0
libtpu: 0.0.40
codegen_flags: <defaults>
</compile_context>

<pallas_src>
import math
import functools

import jax
import jax.numpy as jnp
from jax import lax
from jax.experimental import pallas as pl
from jax.experimental.pallas import tpu as pltpu

LANE = 128


def _round_up(v, m):
    return pl.cdiv(v, m) * m


def _full_spec(shape):
    # Whole array as a single VMEM-resident block (grid is empty).
    return pl.BlockSpec(shape, lambda: tuple(0 for _ in shape))


# ----------------------------------------------------------------------------
# Fused forward kernel (single invocation; all operands resident in VMEM)
# ----------------------------------------------------------------------------
def _gcn_fused_kernel(x_ref, adj_ref, w0_ref, b0_ref, wc_ref, w1_ref, b1_ref,
                      o_ref, h_ref, x0_ref, *, alpha, num_layers, num_classes):
    # ---- lins[0] + relu  (x_0) --------------------------------------------
    h0 = jnp.dot(x_ref[...], w0_ref[...], preferred_element_type=jnp.float32)
    h0 = jnp.maximum(h0 + b0_ref[...], 0.0)
    h_ref[...] = h0
    x0_ref[...] = h0

    # Adjacency read from VMEM once, reused by all layers (bf16 operand).
    adj = adj_ref[...]

    # ---- GCN2Conv layers (identity mapping folded into wc) -----------------
    for l in range(num_layers):                 # static, tiny trip count
        h_bf16 = h_ref[...].astype(jnp.bfloat16)
        p = jnp.dot(adj, h_bf16, preferred_element_type=jnp.float32)
        m = (1.0 - alpha) * p + alpha * x0_ref[...]
        # wc_ref[l] = (1-beta_l)*I + beta_l*W_l  (precomputed, zero-padded)
        h_ref[...] = jnp.maximum(
            jnp.dot(m, wc_ref[l], preferred_element_type=jnp.float32), 0.0)

    # ---- lins[1] + log_softmax (mask padded class lanes) --------------------
    y = jnp.dot(h_ref[...], w1_ref[...], preferred_element_type=jnp.float32)
    y = y + b1_ref[...]
    col = lax.broadcasted_iota(jnp.int32, y.shape, 1)
    y_m = jnp.where(col < num_classes, y, -jnp.inf)
    mx = jnp.max(y_m, axis=-1, keepdims=True)
    lse = mx + jnp.log(jnp.sum(jnp.exp(y_m - mx), axis=-1, keepdims=True))
    o_ref[...] = y - lse


# ----------------------------------------------------------------------------
# Wrapper: pad to 128-lane-dense layout, fold identity into conv weights
# ----------------------------------------------------------------------------
def gcn_forward(x, adj, w_lin0, b_lin0, w_lin1, b_lin1, conv_ws, alpha, theta):
    N, F = x.shape
    HID = w_lin0.shape[1]
    CLS = w_lin1.shape[1]
    L = len(conv_ws)
    Hp = _round_up(HID, LANE)
    Cp = _round_up(CLS, LANE)

    f32 = jnp.float32

    # lins[0]: zero-pad hidden columns (padded hidden lanes stay exactly 0
    # through relu and every subsequent layer).
    w0p = jnp.zeros((F, Hp), f32).at[:, :HID].set(w_lin0.astype(f32))
    b0p = jnp.zeros((1, Hp), f32).at[0, :HID].set(b_lin0.astype(f32))

    # GCN2Conv weights: fold (1-beta)*I + beta*W, then zero-pad to (Hp, Hp).
    eye = jnp.eye(HID, dtype=f32)
    folded = []
    for layer, w in enumerate(conv_ws, start=1):
        beta = math.log(theta / layer + 1.0)
        wf = (1.0 - beta) * eye + beta * w.astype(f32)
        folded.append(jnp.zeros((Hp, Hp), f32).at[:HID, :HID].set(wf))
    wc = jnp.stack(folded, axis=0)                      # (L, Hp, Hp)

    # lins[1]: zero-pad rows/cols (padded logits are masked in-kernel).
    w1p = jnp.zeros((Hp, Cp), f32).at[:HID, :CLS].set(w_lin1.astype(f32))
    b1p = jnp.zeros((1, Cp), f32).at[0, :CLS].set(b_lin1.astype(f32))

    # Adjacency streamed as bf16 (f32 accumulation inside the kernel).
    adj_bf16 = adj.astype(jnp.bfloat16)

    kernel = functools.partial(_gcn_fused_kernel,
                               alpha=float(alpha),
                               num_layers=L,
                               num_classes=CLS)

    out_padded = pl.pallas_call(
        kernel,
        out_shape=jax.ShapeDtypeStruct((N, Cp), f32),
        in_specs=[
            _full_spec((N, F)),        # x
            _full_spec((N, N)),        # adj (bf16)
            _full_spec((F, Hp)),       # w_lin0
            _full_spec((1, Hp)),       # b_lin0
            _full_spec((L, Hp, Hp)),   # folded conv weights
            _full_spec((Hp, Cp)),      # w_lin1
            _full_spec((1, Cp)),       # b_lin1
        ],
        out_specs=_full_spec((N, Cp)),
        scratch_shapes=[
            pltpu.VMEM((N, Hp), f32),  # h   (resident across layers)
            pltpu.VMEM((N, Hp), f32),  # x_0 (resident across layers)
        ],
        compiler_params=pltpu.CompilerParams(vmem_limit_bytes=32 << 20),
    )(x.astype(f32), adj_bf16, w0p, b0p, wc, w1p, b1p)

    return out_padded[:, :CLS]


# ----------------------------------------------------------------------------
# Pure-JAX reference (same bf16 propagation path) for a correctness check
# ----------------------------------------------------------------------------
def gcn_reference(x, adj, w_lin0, b_lin0, w_lin1, b_lin1, conv_ws, alpha, theta):
    hi = lax.Precision.HIGHEST
    adj_b = adj.astype(jnp.bfloat16)
    h = jnp.maximum(jnp.dot(x, w_lin0, precision=hi) + b_lin0, 0.0)
    x0 = h
    for layer, w in enumerate(conv_ws, start=1):
        beta = math.log(theta / layer + 1.0)
        p = jnp.dot(adj_b, h.astype(jnp.bfloat16),
                    preferred_element_type=jnp.float32)
        m = (1.0 - alpha) * p + alpha * x0
        h = jnp.maximum((1.0 - beta) * m + beta * jnp.dot(m, w, precision=hi),
                        0.0)
    y = jnp.dot(h, w_lin1, precision=hi) + b_lin1
    return jax.nn.log_softmax(y, axis=-1)


# ----------------------------------------------------------------------------
# Demo
# ----------------------------------------------------------------------------
if __name__ == "__main__":
    N = 128            # number of graph nodes
    FEAT = 64          # feature_dim
    HID = 32           # hidden_channels
    CLS = 16           # num_classes
    NUM_LAYERS = 2
    ALPHA = 0.1
    THETA = 0.5

    key = jax.random.PRNGKey(0)
    k_x, k_a, k_w0, k_b0, k_w1, k_b1, k_conv = jax.random.split(key, 7)

    # Node features.
    x = jax.random.normal(k_x, (N, FEAT), dtype=jnp.float32)

    # Dense stand-in for the SparseTensor adjacency: random sparse pattern,
    # symmetrized, self-loops, symmetric normalization (precomputed, since
    # GCN2Conv is instantiated with normalize=False).
    a = (jax.random.uniform(k_a, (N, N)) < 0.05).astype(jnp.float32)
    adj = jnp.minimum(a + a.T, 1.0) + jnp.eye(N, dtype=jnp.float32)
    deg = jnp.sum(adj, axis=1, keepdims=True)
    adj = adj / jnp.sqrt(deg) / jnp.sqrt(deg.T)

    # Deterministic parameter init (shapes match the nn.Module __init__).
    w_lin0 = jax.random.normal(k_w0, (FEAT, HID), jnp.float32) / math.sqrt(FEAT)
    b_lin0 = jax.random.normal(k_b0, (HID,), jnp.float32) * 0.01
    w_lin1 = jax.random.normal(k_w1, (HID, CLS), jnp.float32) / math.sqrt(HID)
    b_lin1 = jax.random.normal(k_b1, (CLS,), jnp.float32) * 0.01
    conv_ws = [
        jax.random.normal(jax.random.fold_in(k_conv, l), (HID, HID), jnp.float32)
        / math.sqrt(HID)
        for l in range(NUM_LAYERS)
    ]

    out = gcn_forward(x, adj, w_lin0, b_lin0, w_lin1, b_lin1,
                      conv_ws, ALPHA, THETA)
    jax.block_until_ready(out)

    assert out.shape == (N, CLS) and out.dtype == jnp.float32
    # log_softmax rows must sum (in prob space) to ~1.
    assert bool(jnp.all(jnp.abs(jnp.sum(jnp.exp(out), axis=-1) - 1.0) < 1e-4))

    # Compare against a pure-JAX reference using the same bf16 propagation.
    ref = gcn_reference(x, adj, w_lin0, b_lin0, w_lin1, b_lin1,
                        conv_ws, ALPHA, THETA)
    max_err = float(jnp.max(jnp.abs(out - ref)))
    assert max_err < 2e-2, f"max |kernel - reference| = {max_err}"

    print("KERNEL_OK")
</pallas_src>

<mosaic_0001>
module attributes {stable_mosaic.version = 11 : i64} {
  func.func @_gcn_fused_kernel(%arg0: memref<128x64xf32, #tpu.memory_space<vmem>>, %arg1: memref<128x128xbf16, #tpu.memory_space<vmem>>, %arg2: memref<64x128xf32, #tpu.memory_space<vmem>>, %arg3: memref<1x128xf32, #tpu.memory_space<vmem>>, %arg4: memref<2x128x128xf32, #tpu.memory_space<vmem>>, %arg5: memref<128x128xf32, #tpu.memory_space<vmem>>, %arg6: memref<1x128xf32, #tpu.memory_space<vmem>>, %arg7: memref<128x128xf32, #tpu.memory_space<vmem>>, %arg8: memref<128x128xf32, #tpu.memory_space<vmem>>, %arg9: memref<128x128xf32, #tpu.memory_space<vmem>>) attributes {dimension_semantics = [], scalar_prefetch = 0 : i64, scratch_operands = 2 : i64, tpu.core_type = #tpu.core_type<tc>} {
    %c0 = arith.constant 0 : index
    %c0_0 = arith.constant 0 : index
    %0 = vector.load %arg0[%c0, %c0_0] : memref<128x64xf32, #tpu.memory_space<vmem>>, vector<128x64xf32>
    %c0_1 = arith.constant 0 : index
    %c0_2 = arith.constant 0 : index
    %1 = vector.load %arg2[%c0_1, %c0_2] : memref<64x128xf32, #tpu.memory_space<vmem>>, vector<64x128xf32>
    %cst = arith.constant dense<0.000000e+00> : vector<128x128xf32>
    %2 = tpu.matmul %0, %1, %cst {dimension_numbers = #tpu.dot_dimension_numbers<[1], [0], [0], [1], [0, 0, 1, 1], [], []>} : vector<128x64xf32>, vector<64x128xf32>, vector<128x128xf32> -> vector<128x128xf32>
    %c0_3 = arith.constant 0 : index
    %c0_4 = arith.constant 0 : index
    %3 = vector.load %arg3[%c0_3, %c0_4] : memref<1x128xf32, #tpu.memory_space<vmem>>, vector<1x128xf32>
    %4 = vector.broadcast %3 : vector<1x128xf32> to vector<128x128xf32>
    %5 = arith.addf %2, %4 : vector<128x128xf32>
    %cst_5 = arith.constant 0.000000e+00 : f32
    %6 = vector.broadcast %cst_5 : f32 to vector<128x128xf32>
    %7 = arith.maximumf %5, %6 : vector<128x128xf32>
    %c0_6 = arith.constant 0 : index
    %c0_7 = arith.constant 0 : index
    %8 = vector.load %arg8[%c0_6, %c0_7] : memref<128x128xf32, #tpu.memory_space<vmem>>, vector<128x128xf32>
    tpu.vector_store %arg8[%c0_6, %c0_7], %7 {strides = array<i32>} : memref<128x128xf32, #tpu.memory_space<vmem>>, vector<128x128xf32>,
    %c0_8 = arith.constant 0 : index
    %c0_9 = arith.constant 0 : index
    %9 = vector.load %arg9[%c0_8, %c0_9] : memref<128x128xf32, #tpu.memory_space<vmem>>, vector<128x128xf32>
    tpu.vector_store %arg9[%c0_8, %c0_9], %7 {strides = array<i32>} : memref<128x128xf32, #tpu.memory_space<vmem>>, vector<128x128xf32>,
    %c0_10 = arith.constant 0 : index
    %c0_11 = arith.constant 0 : index
    %10 = vector.load %arg1[%c0_10, %c0_11] : memref<128x128xbf16, #tpu.memory_space<vmem>>, vector<128x128xbf16>
    %c0_12 = arith.constant 0 : index
    %c0_13 = arith.constant 0 : index
    %11 = vector.load %arg8[%c0_12, %c0_13] : memref<128x128xf32, #tpu.memory_space<vmem>>, vector<128x128xf32>
    %12 = arith.truncf %11 : vector<128x128xf32> to vector<128x128xbf16>
    %cst_14 = arith.constant dense<0.000000e+00> : vector<128x128xf32>
    %13 = tpu.matmul %10, %12, %cst_14 {dimension_numbers = #tpu.dot_dimension_numbers<[1], [0], [0], [1], [0, 0, 1, 1], [], []>} : vector<128x128xbf16>, vector<128x128xbf16>, vector<128x128xf32> -> vector<128x128xf32>
    %cst_15 = arith.constant 0.899999976 : f32
    %14 = vector.broadcast %cst_15 : f32 to vector<128x128xf32>
    %15 = arith.mulf %14, %13 : vector<128x128xf32>
    %c0_16 = arith.constant 0 : index
    %c0_17 = arith.constant 0 : index
    %16 = vector.load %arg9[%c0_16, %c0_17] : memref<128x128xf32, #tpu.memory_space<vmem>>, vector<128x128xf32>
    %cst_18 = arith.constant 1.000000e-01 : f32
    %17 = vector.broadcast %cst_18 : f32 to vector<128x128xf32>
    %18 = arith.mulf %17, %16 : vector<128x128xf32>
    %19 = arith.addf %15, %18 : vector<128x128xf32>
    %c0_19 = arith.constant 0 : index
    %c0_20 = arith.constant 0 : index
    %c0_21 = arith.constant 0 : index
    %20 = vector.load %arg4[%c0_19, %c0_20, %c0_21] : memref<2x128x128xf32, #tpu.memory_space<vmem>>, vector<1x128x128xf32>
    %21 = vector.shape_cast %20 : vector<1x128x128xf32> to vector<128x128xf32>
    %cst_22 = arith.constant dense<0.000000e+00> : vector<128x128xf32>
    %22 = tpu.matmul %19, %21, %cst_22 {dimension_numbers = #tpu.dot_dimension_numbers<[1], [0], [0], [1], [0, 0, 1, 1], [], []>} : vector<128x128xf32>, vector<128x128xf32>, vector<128x128xf32> -> vector<128x128xf32>
    %cst_23 = arith.constant 0.000000e+00 : f32
    %23 = vector.broadcast %cst_23 : f32 to vector<128x128xf32>
    %24 = arith.maximumf %22, %23 : vector<128x128xf32>
    %c0_24 = arith.constant 0 : index
    %c0_25 = arith.constant 0 : index
    %25 = vector.load %arg8[%c0_24, %c0_25] : memref<128x128xf32, #tpu.memory_space<vmem>>, vector<128x128xf32>
    tpu.vector_store %arg8[%c0_24, %c0_25], %24 {strides = array<i32>} : memref<128x128xf32, #tpu.memory_space<vmem>>, vector<128x128xf32>,
    %c0_26 = arith.constant 0 : index
    %c0_27 = arith.constant 0 : index
    %26 = vector.load %arg8[%c0_26, %c0_27] : memref<128x128xf32, #tpu.memory_space<vmem>>, vector<128x128xf32>
    %27 = arith.truncf %26 : vector<128x128xf32> to vector<128x128xbf16>
    %cst_28 = arith.constant dense<0.000000e+00> : vector<128x128xf32>
    %28 = tpu.matmul %10, %27, %cst_28 {dimension_numbers = #tpu.dot_dimension_numbers<[1], [0], [0], [1], [0, 0, 1, 1], [], []>} : vector<128x128xbf16>, vector<128x128xbf16>, vector<128x128xf32> -> vector<128x128xf32>
    %cst_29 = arith.constant 0.899999976 : f32
    %29 = vector.broadcast %cst_29 : f32 to vector<128x128xf32>
    %30 = arith.mulf %29, %28 : vector<128x128xf32>
    %c0_30 = arith.constant 0 : index
    %c0_31 = arith.constant 0 : index
    %31 = vector.load %arg9[%c0_30, %c0_31] : memref<128x128xf32, #tpu.memory_space<vmem>>, vector<128x128xf32>
    %cst_32 = arith.constant 1.000000e-01 : f32
    %32 = vector.broadcast %cst_32 : f32 to vector<128x128xf32>
    %33 = arith.mulf %32, %31 : vector<128x128xf32>
    %34 = arith.addf %30, %33 : vector<128x128xf32>
    %c1 = arith.constant 1 : index
    %c0_33 = arith.constant 0 : index
    %c0_34 = arith.constant 0 : index
    %35 = vector.load %arg4[%c1, %c0_33, %c0_34] : memref<2x128x128xf32, #tpu.memory_space<vmem>>, vector<1x128x128xf32>
    %36 = vector.shape_cast %35 : vector<1x128x128xf32> to vector<128x128xf32>
    %cst_35 = arith.constant dense<0.000000e+00> : vector<128x128xf32>
    %37 = tpu.matmul %34, %36, %cst_35 {dimension_numbers = #tpu.dot_dimension_numbers<[1], [0], [0], [1], [0, 0, 1, 1], [], []>} : vector<128x128xf32>, vector<128x128xf32>, vector<128x128xf32> -> vector<128x128xf32>
    %cst_36 = arith.constant 0.000000e+00 : f32
    %38 = vector.broadcast %cst_36 : f32 to vector<128x128xf32>
    %39 = arith.maximumf %37, %38 : vector<128x128xf32>
    %c0_37 = arith.constant 0 : index
    %c0_38 = arith.constant 0 : index
    %40 = vector.load %arg8[%c0_37, %c0_38] : memref<128x128xf32, #tpu.memory_space<vmem>>, vector<128x128xf32>
    tpu.vector_store %arg8[%c0_37, %c0_38], %39 {strides = array<i32>} : memref<128x128xf32, #tpu.memory_space<vmem>>, vector<128x128xf32>,
    %c0_39 = arith.constant 0 : index
    %c0_40 = arith.constant 0 : index
    %41 = vector.load %arg8[%c0_39, %c0_40] : memref<128x128xf32, #tpu.memory_space<vmem>>, vector<128x128xf32>
    %c0_41 = arith.constant 0 : index
    %c0_42 = arith.constant 0 : index
    %42 = vector.load %arg5[%c0_41, %c0_42] : memref<128x128xf32, #tpu.memory_space<vmem>>, vector<128x128xf32>
    %cst_43 = arith.constant dense<0.000000e+00> : vector<128x128xf32>
    %43 = tpu.matmul %41, %42, %cst_43 {dimension_numbers = #tpu.dot_dimension_numbers<[1], [0], [0], [1], [0, 0, 1, 1], [], []>} : vector<128x128xf32>, vector<128x128xf32>, vector<128x128xf32> -> vector<128x128xf32>
    %c0_44 = arith.constant 0 : index
    %c0_45 = arith.constant 0 : index
    %44 = vector.load %arg6[%c0_44, %c0_45] : memref<1x128xf32, #tpu.memory_space<vmem>>, vector<1x128xf32>
    %45 = vector.broadcast %44 : vector<1x128xf32> to vector<128x128xf32>
    %46 = arith.addf %43, %45 : vector<128x128xf32>
    %47 = tpu.iota {dimensions = array<i32: 1>} : vector<128x128xi32>
    %c16_i32 = arith.constant 16 : i32
    %48 = vector.broadcast %c16_i32 : i32 to vector<128x128xi32>
    %49 = arith.cmpi slt, %47, %48 : vector<128x128xi32>
    %cst_46 = arith.constant 0xFF800000 : f32
    %50 = vector.broadcast %cst_46 : f32 to vector<128x128xf32>
    %51 = arith.select %49, %46, %50 : vector<128x128xi1>, vector<128x128xf32>
    %cst_47 = arith.constant dense<0xFF800000> : vector<128xf32>
    %52 = vector.multi_reduction <maximumf>, %51, %cst_47 [1] : vector<128x128xf32> to vector<128xf32>
    %53 = vector.shape_cast %52 : vector<128xf32> to vector<128x1xf32>
    %54 = vector.broadcast %53 : vector<128x1xf32> to vector<128x128xf32>
    %55 = arith.subf %51, %54 : vector<128x128xf32>
    %56 = math.exp %55 : vector<128x128xf32>
    %cst_48 = arith.constant dense<0.000000e+00> : vector<128xf32>
    %57 = vector.multi_reduction <add>, %56, %cst_48 [1] : vector<128x128xf32> to vector<128xf32>
    %58 = vector.shape_cast %57 : vector<128xf32> to vector<128x1xf32>
    %59 = math.log %58 : vector<128x1xf32>
    %60 = arith.addf %53, %59 : vector<128x1xf32>
    %61 = vector.broadcast %60 : vector<128x1xf32> to vector<128x128xf32>
    %62 = arith.subf %46, %61 : vector<128x128xf32>
    %c0_49 = arith.constant 0 : index
    %c0_50 = arith.constant 0 : index
    %63 = vector.load %arg7[%c0_49, %c0_50] : memref<128x128xf32, #tpu.memory_space<vmem>>, vector<128x128xf32>
    tpu.vector_store %arg7[%c0_49, %c0_50], %62 {strides = array<i32>} : memref<128x128xf32, #tpu.memory_space<vmem>>, vector<128x128xf32>,
    return
  }
}

</mosaic_0001>

<llo_original>
// kernel: tpu_custom_call.1
$region0: #{tpu_custom_call.1}
  #allocation0 [shape = 'u32[]', space=smem, size = 0x4, offset = 0x4, fixed_abs, tag = 'smem constant byte address 0x4 - core index']
  #allocation1 [shape = 'u32[144,128]{1,0:T(1,128)}', space=vmem, size = 0x12000, scoped, tag = 'internal scratch']
  #allocation2 [shape = 'f32[128,128]{1,0:T(8,128)}', space=vmem, size = 0x10000, scoped, tag = 'scratch operand']
  #allocation3 [shape = 'f32[128,128]{1,0:T(8,128)}', space=vmem, size = 0x10000, scoped, tag = 'scratch operand']
  %s0 = inlined_call_operand.vmem [shape: f32[128,64], index: 0, kind: input, shape index: {}]
  %s1 = inlined_call_operand.vmem [shape: bf16[128,128], index: 1, kind: input, shape index: {}]
  %s2 = inlined_call_operand.hbm [shape: f32[64,128], index: 2, kind: input, shape index: {}]
  %s3 = inlined_call_operand.vmem [shape: f32[1,128], index: 3, kind: input, shape index: {}]
  %s4 = inlined_call_operand.hbm [shape: f32[2,128,128], index: 4, kind: input, shape index: {}]
  %s5 = inlined_call_operand.vmem [shape: f32[128,128], index: 5, kind: input, shape index: {}]
  %s6 = inlined_call_operand.vmem [shape: f32[1,128], index: 6, kind: input, shape index: {}]
  %s7 = inlined_call_operand.hbm [shape: f32[128,128], index: 7, kind: output, shape index: {}]
  %s8 = sld [smem:[#allocation0]]
  $region46: #{tpu_custom_call.1} parent=0
    _
  %s10 = ssub.s32 1, %s8
  %s11 = scalar_select 0, %s10, %s8
  $region1: #{tpu_custom_call.1} parent=0
    #allocation4 [shape = 'u8[32768]{0}', space=vmem, size = 0x8000, scoped, tag = 'input window, operand 2, single buffered']
    #allocation5 [shape = 's32[1]{0}', space=sflag, size = 0x4, scoped, tag = 'scoped memory for tpu_custom_call.1']
    #allocation6 [shape = 's32[1]{0}', space=sflag, size = 0x4, scoped, tag = 'scoped memory for tpu_custom_call.1']
    #allocation7 [shape = 'u8[131072]{0}', space=vmem, size = 0x20000, scoped, tag = 'input window, operand 4, single buffered']
    #allocation8 [shape = 's32[1]{0}', space=sflag, size = 0x4, scoped, tag = 'scoped memory for tpu_custom_call.1']
    #allocation9 [shape = 'u8[65536]{0}', space=vmem, size = 0x10000, scoped, tag = 'output window, operand 0, single buffered']
    %12 = vsyncpa [#allocation5], 0
    %13 = vsyncpa [#allocation8], 0
    %14 = vsyncpa [#allocation6], 0
    // Predicated region
    $region2: #{tpu_custom_call.1} parent=1 // pred_check
      _
    $region3: #{tpu_custom_call.1} parent=1 // pred_check_branch
      %16 = sbr.rel (0) target = $region5
    $region4: #{tpu_custom_call.1} parent=1 // pred_region
      _
    $region5: #{tpu_custom_call.1} parent=1 // pred_fallthru
      _
    // Predicated region
    $region6: #{tpu_custom_call.1} parent=1 // pred_check
      _
    $region7: #{tpu_custom_call.1} parent=1 // pred_check_branch
      %18 = sbr.rel (0) target = $region9
    $region8: #{tpu_custom_call.1} parent=1 // pred_region
      _
    $region9: #{tpu_custom_call.1} parent=1 // pred_fallthru
      _
    // Predicated region
    $region10: #{tpu_custom_call.1} parent=1 // pred_check
      _
    $region11: #{tpu_custom_call.1} parent=1 // pred_check_branch
      %20 = sbr.rel (0) target = $region13
    $region12: #{tpu_custom_call.1} parent=1 // pred_region
      %s22 = ssub.s32 1024, 1024
      %23 = vsyncadd [#allocation5], %s22
      %s24 = sshll.u32 [#allocation4], 4
      %s25 = int_to_ptr.vmem [resolvable:$true] %s24
      %30 = dma.hbm_to_vmem [thread:$0]  %s2, 1024, %s25, [#allocation5], 128, 128, 8
    $region13: #{tpu_custom_call.1} parent=1 // pred_fallthru
      _
    // Predicated region
    $region14: #{tpu_custom_call.1} parent=1 // pred_check
      _
    $region15: #{tpu_custom_call.1} parent=1 // pred_check_branch
      %32 = sbr.rel (0) target = $region17
    $region16: #{tpu_custom_call.1} parent=1 // pred_region
      _
    $region17: #{tpu_custom_call.1} parent=1 // pred_fallthru
      _
    // Predicated region
    $region18: #{tpu_custom_call.1} parent=1 // pred_check
      _
    $region19: #{tpu_custom_call.1} parent=1 // pred_check_branch
      %34 = sbr.rel (0) target = $region21
    $region20: #{tpu_custom_call.1} parent=1 // pred_region
      %s36 = ssub.s32 4096, 4096
      %37 = vsyncadd [#allocation8], %s36
      %s38 = sshll.u32 [#allocation7], 4
      %s39 = int_to_ptr.vmem [resolvable:$true] %s38
      %44 = dma.hbm_to_vmem [thread:$0]  %s4, 4096, %s39, [#allocation8], 128, 128, 8
    $region21: #{tpu_custom_call.1} parent=1 // pred_fallthru
      _
    // Predicated region
    $region22: #{tpu_custom_call.1} parent=1 // pred_check
      _
    $region23: #{tpu_custom_call.1} parent=1 // pred_check_branch
      %46 = sbr.rel (0) target = $region25
    $region24: #{tpu_custom_call.1} parent=1 // pred_region
      _
    $region25: #{tpu_custom_call.1} parent=1 // pred_fallthru
      _
    // Predicated region
    $region26: #{tpu_custom_call.1} parent=1 // pred_check
      _
    $region27: #{tpu_custom_call.1} parent=1 // pred_check_branch
      %48 = sbr.rel (0) target = $region29
    $region28: #{tpu_custom_call.1} parent=1 // pred_region
      _
    $region29: #{tpu_custom_call.1} parent=1 // pred_fallthru
      _
    // Predicated region
    $region30: #{tpu_custom_call.1} parent=1 // pred_check
      _
    $region31: #{tpu_custom_call.1} parent=1 // pred_check_branch
      %50 = sbr.rel (0) target = $region33
    $region32: #{tpu_custom_call.1} parent=1 // pred_region
      %51 = dma.done [#allocation5], 1024
    $region33: #{tpu_custom_call.1} parent=1 // pred_fallthru
      _
    // Predicated region
    $region34: #{tpu_custom_call.1} parent=1 // pred_check
      _
    $region35: #{tpu_custom_call.1} parent=1 // pred_check_branch
      %53 = sbr.rel (0) target = $region37
    $region36: #{tpu_custom_call.1} parent=1 // pred_region
      %54 = dma.done [#allocation8], 4096
    $region37: #{tpu_custom_call.1} parent=1 // pred_fallthru
      _
    %v56 = vld [vmem:[%s0] sm:$0xff]
    %v57 = vld [vmem:[%s0 + $0x8] sm:$0xff]
    %v58 = vld [vmem:[%s0 + $0x10] sm:$0xff]
    %v59 = vld [vmem:[%s0 + $0x18] sm:$0xff]
    %v60 = vld [vmem:[%s0 + $0x20] sm:$0xff]
    %v61 = vld [vmem:[%s0 + $0x28] sm:$0xff]
    %v62 = vld [vmem:[%s0 + $0x30] sm:$0xff]
    %v63 = vld [vmem:[%s0 + $0x38] sm:$0xff]
    %v64 = vld [vmem:[%s0 + $0x40] sm:$0xff]
    %v65 = vld [vmem:[%s0 + $0x48] sm:$0xff]
    %v66 = vld [vmem:[%s0 + $0x50] sm:$0xff]
    %v67 = vld [vmem:[%s0 + $0x58] sm:$0xff]
    %v68 = vld [vmem:[%s0 + $0x60] sm:$0xff]
    %v69 = vld [vmem:[%s0 + $0x68] sm:$0xff]
    %v70 = vld [vmem:[%s0 + $0x70] sm:$0xff]
    %v71 = vld [vmem:[%s0 + $0x78] sm:$0xff]
    %v72 = vld [vmem:[#allocation4] sm:$0xff]
    %v73 = vld [vmem:[#allocation4 + $0x8] sm:$0xff]
    %v74 = vld [vmem:[#allocation4 + $0x10] sm:$0xff]
    %v75 = vld [vmem:[#allocation4 + $0x18] sm:$0xff]
    %v76 = vld [vmem:[#allocation4 + $0x20] sm:$0xff]
    %v77 = vld [vmem:[#allocation4 + $0x28] sm:$0xff]
    %v78 = vld [vmem:[#allocation4 + $0x30] sm:$0xff]
    %v79 = vld [vmem:[#allocation4 + $0x38] sm:$0xff]
    %v80 = vld [vmem:[%s3] sm:$0x1]
    %v82 = vlaneseq
    %v83 = vshrl.u32 %v82, 7
    %v84 = vsub.s32 0, %v83
    %v85 = vrot.slane %v80, %v84
    %vm87 = vcmask 523264
    %v89 = vsel %vm87, %v56, 0
    %v92 = vsel %vm87, %v57, 0
    %v95 = vsel %vm87, %v58, 0
    %v98 = vsel %vm87, %v59, 0
    %v101 = vsel %vm87, %v60, 0
    %v104 = vsel %vm87, %v61, 0
    %v107 = vsel %vm87, %v62, 0
    %v110 = vsel %vm87, %v63, 0
    %v113 = vsel %vm87, %v64, 0
    %v116 = vsel %vm87, %v65, 0
    %v119 = vsel %vm87, %v66, 0
    %v122 = vsel %vm87, %v67, 0
    %v125 = vsel %vm87, %v68, 0
    %v128 = vsel %vm87, %v69, 0
    %v131 = vsel %vm87, %v70, 0
    %v134 = vsel %vm87, %v71, 0
    %136 = vmatprep.subr.mxu0 0.0
    %137 = vmatpush1.msra.mxu0 %v72
    %138 = vmatprep.subr.mxu0 0.0
    %139 = vmatpush1.msra.mxu0 %v73
    %140 = vmatprep.subr.mxu0 0.0
    %141 = vmatpush1.msra.mxu0 %v74
    %142 = vmatprep.subr.mxu0 0.0
    %143 = vmatpush1.msra.mxu0 %v75
    %144 = vmatprep.subr.mxu0 0.0
    %145 = vmatpush1.msra.mxu0 %v76
    %146 = vmatprep.subr.mxu0 0.0
    %147 = vmatpush1.msra.mxu0 %v77
    %148 = vmatprep.subr.mxu0 0.0
    %149 = vmatpush1.msra.mxu0 %v78
    %150 = vmatprep.subr.mxu0 0.0
    %151 = vmatpush1.msra.mxu0 %v79
    %152 = vmatprep.subr.mxu0 0.0
    %153 = vmatpush1.msra.mxu0 0.0
    %154 = vmatprep.subr.mxu0 0.0
    %155 = vmatpush1.msra.mxu0 0.0
    %156 = vmatprep.subr.mxu0 0.0
    %157 = vmatpush1.msra.mxu0 0.0
    %158 = vmatprep.subr.mxu0 0.0
    %159 = vmatpush1.msra.mxu0 0.0
    %160 = vmatprep.subr.mxu0 0.0
    %161 = vmatpush1.msra.mxu0 0.0
    %162 = vmatprep.subr.mxu0 0.0
    %163 = vmatpush1.msra.mxu0 0.0
    %164 = vmatprep.subr.mxu0 0.0
    %165 = vmatpush1.msra.mxu0 0.0
    %166 = vmatprep.subr.mxu0 0.0
    %167 = vmatpush1.msra.mxu0 0.0
    %168 = vmatprep.subr.mxu0 0.0
    %169 = vmatpush1.msra.mxu0 0.0
    %170 = vmatprep.subr.mxu0 0.0
    %171 = vmatpush1.msra.mxu0 0.0
    %172 = vmatprep.subr.mxu0 0.0
    %173 = vmatpush1.msra.mxu0 0.0
    %174 = vmatprep.subr.mxu0 0.0
    %175 = vmatpush1.msra.mxu0 0.0
    %176 = vmatprep.subr.mxu0 0.0
    %177 = vmatpush1.msra.mxu0 0.0
    %178 = vmatprep.subr.mxu0 0.0
    %179 = vmatpush1.msra.mxu0 0.0
    %180 = vmatprep.subr.mxu0 0.0
    %181 = vmatpush1.msra.mxu0 0.0
    %182 = vmatprep.subr.mxu0 0.0
    %183 = vmatpush1.msra.mxu0 0.0
    %184 = vmatprep.subr.mxu0 0.0
    %185 = vmatpush1.msra.mxu0 0.0
    %186 = vmatprep.subr.mxu0 0.0
    %187 = vmatpush1.msra.mxu0 0.0
    %188 = vmatprep.subr.mxu0 0.0
    %189 = vmatpush1.msra.mxu0 0.0
    %190 = vmatprep.subr.mxu0 0.0
    %191 = vmatpush1.msra.mxu0 0.0
    %192 = vmatprep.subr.mxu0 0.0
    %193 = vmatpush1.msra.mxu0 0.0
    %194 = vmatprep.subr.mxu0 0.0
    %195 = vmatpush1.msra.mxu0 0.0
    %196 = vmatprep.subr.mxu0 0.0
    %197 = vmatpush1.msra.mxu0 0.0
    %198 = vmatprep.subr.mxu0 0.0
    %199 = vmatpush1.msra.mxu0 0.0
    %200 = vmatprep.mubr.f32.mxu0 0.0
    %201 = vmatmul.mubr.f32.gmra.mrb[0].mxu0 %v89
    %v202 = vpop.f32.mrb[0].mxu0
    %v203 = vadd.f32 %v85, %v202
    %v204 = vpop.f32.mrb[0].mxu0
    %205 = vmatprep.mubr.f32.mxu0 0.0
    %206 = vmatmul.mubr.f32.gmra.mrb[0].mxu0 %v92
    %v207 = vpop.f32.mrb[0].mxu0
    %v208 = vadd.f32 %v85, %v207
    %v209 = vpop.f32.mrb[0].mxu0
    %210 = vmatprep.mubr.f32.mxu0 0.0
    %211 = vmatmul.mubr.f32.gmra.mrb[0].mxu0 %v95
    %v212 = vpop.f32.mrb[0].mxu0
    %v213 = vadd.f32 %v85, %v212
    %v214 = vpop.f32.mrb[0].mxu0
    %215 = vmatprep.mubr.f32.mxu0 0.0
    %216 = vmatmul.mubr.f32.gmra.mrb[0].mxu0 %v98
    %v217 = vpop.f32.mrb[0].mxu0
    %v218 = vadd.f32 %v85, %v217
    %v219 = vpop.f32.mrb[0].mxu0
    %220 = vmatprep.mubr.f32.mxu0 0.0
    %221 = vmatmul.mubr.f32.gmra.mrb[0].mxu0 %v101
    %v222 = vpop.f32.mrb[0].mxu0
    %v223 = vadd.f32 %v85, %v222
    %v224 = vpop.f32.mrb[0].mxu0
    %225 = vmatprep.mubr.f32.mxu0 0.0
    %226 = vmatmul.mubr.f32.gmra.mrb[0].mxu0 %v104
    %v227 = vpop.f32.mrb[0].mxu0
    %v228 = vadd.f32 %v85, %v227
    %v229 = vpop.f32.mrb[0].mxu0
    %230 = vmatprep.mubr.f32.mxu0 0.0
    %231 = vmatmul.mubr.f32.gmra.mrb[0].mxu0 %v107
    %v232 = vpop.f32.mrb[0].mxu0
    %v233 = vadd.f32 %v85, %v232
    %v234 = vpop.f32.mrb[0].mxu0
    %235 = vmatprep.mubr.f32.mxu0 0.0
    %236 = vmatmul.mubr.f32.gmra.mrb[0].mxu0 %v110
    %v237 = vpop.f32.mrb[0].mxu0
    %v238 = vadd.f32 %v85, %v237
    %v239 = vpop.f32.mrb[0].mxu0
    %240 = vmatprep.mubr.f32.mxu0 0.0
    %241 = vmatmul.mubr.f32.gmra.mrb[0].mxu0 %v113
    %v242 = vpop.f32.mrb[0].mxu0
    %v243 = vadd.f32 %v85, %v242
    %v244 = vpop.f32.mrb[0].mxu0
    %245 = vmatprep.mubr.f32.mxu0 0.0
    %246 = vmatmul.mubr.f32.gmra.mrb[0].mxu0 %v116
    %v247 = vpop.f32.mrb[0].mxu0
    %v248 = vadd.f32 %v85, %v247
    %v249 = vpop.f32.mrb[0].mxu0
    %250 = vmatprep.mubr.f32.mxu0 0.0
    %251 = vmatmul.mubr.f32.gmra.mrb[0].mxu0 %v119
    %v252 = vpop.f32.mrb[0].mxu0
    %v253 = vadd.f32 %v85, %v252
    %v254 = vpop.f32.mrb[0].mxu0
    %255 = vmatprep.mubr.f32.mxu0 0.0
    %256 = vmatmul.mubr.f32.gmra.mrb[0].mxu0 %v122
    %v257 = vpop.f32.mrb[0].mxu0
    %v258 = vadd.f32 %v85, %v257
    %v259 = vpop.f32.mrb[0].mxu0
    %260 = vmatprep.mubr.f32.mxu0 0.0
    %261 = vmatmul.mubr.f32.gmra.mrb[0].mxu0 %v125
    %v262 = vpop.f32.mrb[0].mxu0
    %v263 = vadd.f32 %v85, %v262
    %v264 = vpop.f32.mrb[0].mxu0
    %265 = vmatprep.mubr.f32.mxu0 0.0
    %266 = vmatmul.mubr.f32.gmra.mrb[0].mxu0 %v128
    %v267 = vpop.f32.mrb[0].mxu0
    %v268 = vadd.f32 %v85, %v267
    %v269 = vpop.f32.mrb[0].mxu0
    %270 = vmatprep.mubr.f32.mxu0 0.0
    %271 = vmatmul.mubr.f32.gmra.mrb[0].mxu0 %v131
    %v272 = vpop.f32.mrb[0].mxu0
    %v273 = vadd.f32 %v85, %v272
    %v274 = vpop.f32.mrb[0].mxu0
    %275 = vmatprep.mubr.f32.mxu0 0.0
    %276 = vmatmul.mubr.f32.gmra.mrb[0].mxu0 %v134
    %v277 = vpop.f32.mrb[0].mxu0
    %v278 = vadd.f32 %v85, %v277
    %v279 = vpop.f32.mrb[0].mxu0
    %280 = vdwg.mxu0
    %v281 = vmax.f32 %v203, 0.0
    %v282 = vmax.f32 %v208, 0.0
    %v283 = vmax.f32 %v213, 0.0
    %v284 = vmax.f32 %v218, 0.0
    %v285 = vmax.f32 %v223, 0.0
    %v286 = vmax.f32 %v228, 0.0
    %v287 = vmax.f32 %v233, 0.0
    %v288 = vmax.f32 %v238, 0.0
    %v289 = vmax.f32 %v243, 0.0
    %v290 = vmax.f32 %v248, 0.0
    %v291 = vmax.f32 %v253, 0.0
    %v292 = vmax.f32 %v258, 0.0
    %v293 = vmax.f32 %v263, 0.0
    %v294 = vmax.f32 %v268, 0.0
    %v295 = vmax.f32 %v273, 0.0
    %v296 = vmax.f32 %v278, 0.0
    %297 = vst [vmem:[#allocation2] sm:$0xff] %v281
    %298 = vst [vmem:[#allocation2 + $0x8] sm:$0xff] %v282
    %299 = vst [vmem:[#allocation2 + $0x10] sm:$0xff] %v283
    %300 = vst [vmem:[#allocation2 + $0x18] sm:$0xff] %v284
    %301 = vst [vmem:[#allocation2 + $0x20] sm:$0xff] %v285
    %302 = vst [vmem:[#allocation2 + $0x28] sm:$0xff] %v286
    %303 = vst [vmem:[#allocation2 + $0x30] sm:$0xff] %v287
    %304 = vst [vmem:[#allocation2 + $0x38] sm:$0xff] %v288
    %305 = vst [vmem:[#allocation2 + $0x40] sm:$0xff] %v289
    %306 = vst [vmem:[#allocation2 + $0x48] sm:$0xff] %v290
    %307 = vst [vmem:[#allocation2 + $0x50] sm:$0xff] %v291
    %308 = vst [vmem:[#allocation2 + $0x58] sm:$0xff] %v292
    %309 = vst [vmem:[#allocation2 + $0x60] sm:$0xff] %v293
    %310 = vst [vmem:[#allocation2 + $0x68] sm:$0xff] %v294
    %311 = vst [vmem:[#allocation2 + $0x70] sm:$0xff] %v295
    %312 = vst [vmem:[#allocation2 + $0x78] sm:$0xff] %v296
    %313 = vst [vmem:[#allocation3] sm:$0xff] %v281
    %314 = vst [vmem:[#allocation3 + $0x8] sm:$0xff] %v282
    %315 = vst [vmem:[#allocation3 + $0x10] sm:$0xff] %v283
    %316 = vst [vmem:[#allocation3 + $0x18] sm:$0xff] %v284
    %317 = vst [vmem:[#allocation3 + $0x20] sm:$0xff] %v285
    %318 = vst [vmem:[#allocation3 + $0x28] sm:$0xff] %v286
    %319 = vst [vmem:[#allocation3 + $0x30] sm:$0xff] %v287
    %320 = vst [vmem:[#allocation3 + $0x38] sm:$0xff] %v288
    %321 = vst [vmem:[#allocation3 + $0x40] sm:$0xff] %v289
    %322 = vst [vmem:[#allocation3 + $0x48] sm:$0xff] %v290
    %323 = vst [vmem:[#allocation3 + $0x50] sm:$0xff] %v291
    %324 = vst [vmem:[#allocation3 + $0x58] sm:$0xff] %v292
    %325 = vst [vmem:[#allocation3 + $0x60] sm:$0xff] %v293
    %326 = vst [vmem:[#allocation3 + $0x68] sm:$0xff] %v294
    %327 = vst [vmem:[#allocation3 + $0x70] sm:$0xff] %v295
    %328 = vst [vmem:[#allocation3 + $0x78] sm:$0xff] %v296
    %v329 = vld [vmem:[%s1] sm:$0xf]
    %v330 = vld [vmem:[%s1 + $0x4] sm:$0xf]
    %v331 = vld [vmem:[%s1 + $0x8] sm:$0xf]
    %v332 = vld [vmem:[%s1 + $0xc] sm:$0xf]
    %v333 = vld [vmem:[%s1 + $0x10] sm:$0xf]
    %v334 = vld [vmem:[%s1 + $0x14] sm:$0xf]
    %v335 = vld [vmem:[%s1 + $0x18] sm:$0xf]
    %v336 = vld [vmem:[%s1 + $0x1c] sm:$0xf]
    %v337 = vld [vmem:[%s1 + $0x20] sm:$0xf]
    %v338 = vld [vmem:[%s1 + $0x24] sm:$0xf]
    %v339 = vld [vmem:[%s1 + $0x28] sm:$0xf]
    %v340 = vld [vmem:[%s1 + $0x2c] sm:$0xf]
    %v341 = vld [vmem:[%s1 + $0x30] sm:$0xf]
    %v342 = vld [vmem:[%s1 + $0x34] sm:$0xf]
    %v343 = vld [vmem:[%s1 + $0x38] sm:$0xf]
    %v344 = vld [vmem:[%s1 + $0x3c] sm:$0xf]
    %v345 = vld [vmem:[#allocation2] sm:$0xff]
    %v346 = vld [vmem:[#allocation2 + $0x8] sm:$0xff]
    %v347 = vld [vmem:[#allocation2 + $0x10] sm:$0xff]
    %v348 = vld [vmem:[#allocation2 + $0x18] sm:$0xff]
    %v349 = vld [vmem:[#allocation2 + $0x20] sm:$0xff]
    %v350 = vld [vmem:[#allocation2 + $0x28] sm:$0xff]
    %v351 = vld [vmem:[#allocation2 + $0x30] sm:$0xff]
    %v352 = vld [vmem:[#allocation2 + $0x38] sm:$0xff]
    %v353 = vld [vmem:[#allocation2 + $0x40] sm:$0xff]
    %v354 = vld [vmem:[#allocation2 + $0x48] sm:$0xff]
    %v355 = vld [vmem:[#allocation2 + $0x50] sm:$0xff]
    %v356 = vld [vmem:[#allocation2 + $0x58] sm:$0xff]
    %v357 = vld [vmem:[#allocation2 + $0x60] sm:$0xff]
    %v358 = vld [vmem:[#allocation2 + $0x68] sm:$0xff]
    %v359 = vld [vmem:[#allocation2 + $0x70] sm:$0xff]
    %v360 = vld [vmem:[#allocation2 + $0x78] sm:$0xff]
    %v361 = vpack.c.bf16 %v346, %v345
    %v362 = vpack.c.bf16 %v348, %v347
    %v363 = vpack.c.bf16 %v350, %v349
    %v364 = vpack.c.bf16 %v352, %v351
    %v365 = vpack.c.bf16 %v354, %v353
    %v366 = vpack.c.bf16 %v356, %v355
    %v367 = vpack.c.bf16 %v358, %v357
    %v368 = vpack.c.bf16 %v360, %v359
    %v385 = vunpack.c.l.b16 %v329
    %v386 = vunpack.c.l.b16 %v330
    %v387 = vunpack.c.l.b16 %v331
    %v388 = vunpack.c.l.b16 %v332
    %v389 = vunpack.c.l.b16 %v333
    %v390 = vunpack.c.l.b16 %v334
    %v391 = vunpack.c.l.b16 %v335
    %v392 = vunpack.c.l.b16 %v336
    %v393 = vunpack.c.l.b16 %v337
    %v394 = vunpack.c.l.b16 %v338
    %v395 = vunpack.c.l.b16 %v339
    %v396 = vunpack.c.l.b16 %v340
    %v397 = vunpack.c.l.b16 %v341
    %v398 = vunpack.c.l.b16 %v342
    %v399 = vunpack.c.l.b16 %v343
    %v400 = vunpack.c.l.b16 %v344
    %v401 = vpack.c.b16 %v386, %v385
    %v402 = vpack.c.b16 %v388, %v387
    %v403 = vpack.c.b16 %v390, %v389
    %v404 = vpack.c.b16 %v392, %v391
    %v405 = vpack.c.b16 %v394, %v393
    %v406 = vpack.c.b16 %v396, %v395
    %v407 = vpack.c.b16 %v398, %v397
    %v408 = vpack.c.b16 %v400, %v399
    %417 = vmatprep.subr.bf16.mxu0 0
    %418 = vmatpush1.bf16.msra.mxu0 %v361
    %419 = vmatprep.subr.bf16.mxu0 0
    %420 = vmatpush1.bf16.msra.mxu0 %v362
    %421 = vmatprep.subr.bf16.mxu0 0
    %422 = vmatpush1.bf16.msra.mxu0 %v363
    %423 = vmatprep.subr.bf16.mxu0 0
    %424 = vmatpush1.bf16.msra.mxu0 %v364
    %425 = vmatprep.subr.bf16.mxu0 0
    %426 = vmatpush1.bf16.msra.mxu0 %v365
    %427 = vmatprep.subr.bf16.mxu0 0
    %428 = vmatpush1.bf16.msra.mxu0 %v366
    %429 = vmatprep.subr.bf16.mxu0 0
    %430 = vmatpush1.bf16.msra.mxu0 %v367
    %431 = vmatprep.subr.bf16.mxu0 0
    %432 = vmatpush1.bf16.msra.mxu0 %v368
    %433 = vmatprep.subr.bf16.mxu0 0
    %434 = vmatpush1.bf16.msra.mxu0 0
    %435 = vmatprep.subr.bf16.mxu0 0
    %436 = vmatpush1.bf16.msra.mxu0 0
    %437 = vmatprep.subr.bf16.mxu0 0
    %438 = vmatpush1.bf16.msra.mxu0 0
    %439 = vmatprep.subr.bf16.mxu0 0
    %440 = vmatpush1.bf16.msra.mxu0 0
    %441 = vmatprep.subr.bf16.mxu0 0
    %442 = vmatpush1.bf16.msra.mxu0 0
    %443 = vmatprep.subr.bf16.mxu0 0
    %444 = vmatpush1.bf16.msra.mxu0 0
    %445 = vmatprep.subr.bf16.mxu0 0
    %446 = vmatpush1.bf16.msra.mxu0 0
    %447 = vmatprep.subr.bf16.mxu0 0
    %448 = vmatpush1.bf16.msra.mxu0 0
    %449 = vmatprep.mubr.bf16.mxu0 0
    %450 = vmatmul.mubr.bf16.gmra.mrb[0].mxu0 %v401
    %v451 = vpop.f32.mrb[0].mxu0
    %v452 = vadd.f32 0.0, %v451
    %v453 = vpop.f32.mrb[0].mxu0
    %v454 = vpop.f32.mrb[0].mxu0
    %v455 = vadd.f32 0.0, %v454
    %v456 = vpop.f32.mrb[0].mxu0
    %457 = vmatprep.mubr.bf16.mxu0 0
    %458 = vmatmul.mubr.bf16.gmra.mrb[0].mxu0 %v402
    %v459 = vpop.f32.mrb[0].mxu0
    %v460 = vadd.f32 0.0, %v459
    %v461 = vpop.f32.mrb[0].mxu0
    %v462 = vpop.f32.mrb[0].mxu0
    %v463 = vadd.f32 0.0, %v462
    %v464 = vpop.f32.mrb[0].mxu0
    %465 = vmatprep.mubr.bf16.mxu0 0
    %466 = vmatmul.mubr.bf16.gmra.mrb[0].mxu0 %v403
    %v467 = vpop.f32.mrb[0].mxu0
    %v468 = vadd.f32 0.0, %v467
    %v469 = vpop.f32.mrb[0].mxu0
    %v470 = vpop.f32.mrb[0].mxu0
    %v471 = vadd.f32 0.0, %v470
    %v472 = vpop.f32.mrb[0].mxu0
    %473 = vmatprep.mubr.bf16.mxu0 0
    %474 = vmatmul.mubr.bf16.gmra.mrb[0].mxu0 %v404
    %v475 = vpop.f32.mrb[0].mxu0
    %v476 = vadd.f32 0.0, %v475
    %v477 = vpop.f32.mrb[0].mxu0
    %v478 = vpop.f32.mrb[0].mxu0
    %v479 = vadd.f32 0.0, %v478
    %v480 = vpop.f32.mrb[0].mxu0
    %481 = vmatprep.mubr.bf16.mxu0 0
    %482 = vmatmul.mubr.bf16.gmra.mrb[0].mxu0 %v405
    %v483 = vpop.f32.mrb[0].mxu0
    %v484 = vadd.f32 0.0, %v483
    %v485 = vpop.f32.mrb[0].mxu0
    %v486 = vpop.f32.mrb[0].mxu0
    %v487 = vadd.f32 0.0, %v486
    %v488 = vpop.f32.mrb[0].mxu0
    %489 = vmatprep.mubr.bf16.mxu0 0
    %490 = vmatmul.mubr.bf16.gmra.mrb[0].mxu0 %v406
    %v491 = vpop.f32.mrb[0].mxu0
    %v492 = vadd.f32 0.0, %v491
    %v493 = vpop.f32.mrb[0].mxu0
    %v494 = vpop.f32.mrb[0].mxu0
    %v495 = vadd.f32 0.0, %v494
    %v496 = vpop.f32.mrb[0].mxu0
    %497 = vmatprep.mubr.bf16.mxu0 0
    %498 = vmatmul.mubr.bf16.gmra.mrb[0].mxu0 %v407
    %v499 = vpop.f32.mrb[0].mxu0
    %v500 = vadd.f32 0.0, %v499
    %v501 = vpop.f32.mrb[0].mxu0
    %v502 = vpop.f32.mrb[0].mxu0
    %v503 = vadd.f32 0.0, %v502
    %v504 = vpop.f32.mrb[0].mxu0
    %505 = vmatprep.mubr.bf16.mxu0 0
    %506 = vmatmul.mubr.bf16.gmra.mrb[0].mxu0 %v408
    %v507 = vpop.f32.mrb[0].mxu0
    %v508 = vadd.f32 0.0, %v507
    %v509 = vpop.f32.mrb[0].mxu0
    %v510 = vpop.f32.mrb[0].mxu0
    %v511 = vadd.f32 0.0, %v510
    %v512 = vpop.f32.mrb[0].mxu0
    %513 = vdwg.mxu0
    %v514 = vmul.f32 %v452, 0.9
    %v515 = vmul.f32 %v455, 0.9
    %v516 = vmul.f32 %v460, 0.9
    %v517 = vmul.f32 %v463, 0.9
    %v518 = vmul.f32 %v468, 0.9
    %v519 = vmul.f32 %v471, 0.9
    %v520 = vmul.f32 %v476, 0.9
    %v521 = vmul.f32 %v479, 0.9
    %v522 = vmul.f32 %v484, 0.9
    %v523 = vmul.f32 %v487, 0.9
    %v524 = vmul.f32 %v492, 0.9
    %v525 = vmul.f32 %v495, 0.9
    %v526 = vmul.f32 %v500, 0.9
    %v527 = vmul.f32 %v503, 0.9
    %v528 = vmul.f32 %v508, 0.9
    %v529 = vmul.f32 %v511, 0.9
    %v530 = vld [vmem:[#allocation3] sm:$0xff]
    %v531 = vld [vmem:[#allocation3 + $0x8] sm:$0xff]
    %v532 = vld [vmem:[#allocation3 + $0x10] sm:$0xff]
    %v533 = vld [vmem:[#allocation3 + $0x18] sm:$0xff]
    %v534 = vld [vmem:[#allocation3 + $0x20] sm:$0xff]
    %v535 = vld [vmem:[#allocation3 + $0x28] sm:$0xff]
    %v536 = vld [vmem:[#allocation3 + $0x30] sm:$0xff]
    %v537 = vld [vmem:[#allocation3 + $0x38] sm:$0xff]
    %v538 = vld [vmem:[#allocation3 + $0x40] sm:$0xff]
    %v539 = vld [vmem:[#allocation3 + $0x48] sm:$0xff]
    %v540 = vld [vmem:[#allocation3 + $0x50] sm:$0xff]
    %v541 = vld [vmem:[#allocation3 + $0x58] sm:$0xff]
    %v542 = vld [vmem:[#allocation3 + $0x60] sm:$0xff]
    %v543 = vld [vmem:[#allocation3 + $0x68] sm:$0xff]
    %v544 = vld [vmem:[#allocation3 + $0x70] sm:$0xff]
    %v545 = vld [vmem:[#allocation3 + $0x78] sm:$0xff]
    %v546 = vmul.f32 %v530, 0.1
    %v547 = vmul.f32 %v531, 0.1
    %v548 = vmul.f32 %v532, 0.1
    %v549 = vmul.f32 %v533, 0.1
    %v550 = vmul.f32 %v534, 0.1
    %v551 = vmul.f32 %v535, 0.1
    %v552 = vmul.f32 %v536, 0.1
    %v553 = vmul.f32 %v537, 0.1
    %v554 = vmul.f32 %v538, 0.1
    %v555 = vmul.f32 %v539, 0.1
    %v556 = vmul.f32 %v540, 0.1
    %v557 = vmul.f32 %v541, 0.1
    %v558 = vmul.f32 %v542, 0.1
    %v559 = vmul.f32 %v543, 0.1
    %v560 = vmul.f32 %v544, 0.1
    %v561 = vmul.f32 %v545, 0.1
    %v562 = vadd.f32 %v514, %v546
    %v563 = vadd.f32 %v515, %v547
    %v564 = vadd.f32 %v516, %v548
    %v565 = vadd.f32 %v517, %v549
    %v566 = vadd.f32 %v518, %v550
    %v567 = vadd.f32 %v519, %v551
    %v568 = vadd.f32 %v520, %v552
    %v569 = vadd.f32 %v521, %v553
    %v570 = vadd.f32 %v522, %v554
    %v571 = vadd.f32 %v523, %v555
    %v572 = vadd.f32 %v524, %v556
    %v573 = vadd.f32 %v525, %v557
    %v574 = vadd.f32 %v526, %v558
    %v575 = vadd.f32 %v527, %v559
    %v576 = vadd.f32 %v528, %v560
    %v577 = vadd.f32 %v529, %v561
    %v578 = vld [vmem:[#allocation7] sm:$0xff]
    %v579 = vld [vmem:[#allocation7 + $0x8] sm:$0xff]
    %v580 = vld [vmem:[#allocation7 + $0x10] sm:$0xff]
    %v581 = vld [vmem:[#allocation7 + $0x18] sm:$0xff]
    %v582 = vld [vmem:[#allocation7 + $0x20] sm:$0xff]
    %v583 = vld [vmem:[#allocation7 + $0x28] sm:$0xff]
    %v584 = vld [vmem:[#allocation7 + $0x30] sm:$0xff]
    %v585 = vld [vmem:[#allocation7 + $0x38] sm:$0xff]
    %v586 = vld [vmem:[#allocation7 + $0x40] sm:$0xff]
    %v587 = vld [vmem:[#allocation7 + $0x48] sm:$0xff]
    %v588 = vld [vmem:[#allocation7 + $0x50] sm:$0xff]
    %v589 = vld [vmem:[#allocation7 + $0x58] sm:$0xff]
    %v590 = vld [vmem:[#allocation7 + $0x60] sm:$0xff]
    %v591 = vld [vmem:[#allocation7 + $0x68] sm:$0xff]
    %v592 = vld [vmem:[#allocation7 + $0x70] sm:$0xff]
    %v593 = vld [vmem:[#allocation7 + $0x78] sm:$0xff]
    %594 = vmatprep.subr.mxu0 0.0
    %595 = vmatpush1.msra.mxu0 %v578
    %596 = vmatprep.subr.mxu0 0.0
    %597 = vmatpush1.msra.mxu0 %v579
    %598 = vmatprep.subr.mxu0 0.0
    %599 = vmatpush1.msra.mxu0 %v580
    %600 = vmatprep.subr.mxu0 0.0
    %601 = vmatpush1.msra.mxu0 %v581
    %602 = vmatprep.subr.mxu0 0.0
    %603 = vmatpush1.msra.mxu0 %v582
    %604 = vmatprep.subr.mxu0 0.0
    %605 = vmatpush1.msra.mxu0 %v583
    %606 = vmatprep.subr.mxu0 0.0
    %607 = vmatpush1.msra.mxu0 %v584
    %608 = vmatprep.subr.mxu0 0.0
    %609 = vmatpush1.msra.mxu0 %v585
    %610 = vmatprep.subr.mxu0 0.0
    %611 = vmatpush1.msra.mxu0 %v586
    %612 = vmatprep.subr.mxu0 0.0
    %613 = vmatpush1.msra.mxu0 %v587
    %614 = vmatprep.subr.mxu0 0.0
    %615 = vmatpush1.msra.mxu0 %v588
    %616 = vmatprep.subr.mxu0 0.0
    %617 = vmatpush1.msra.mxu0 %v589
    %618 = vmatprep.subr.mxu0 0.0
    %619 = vmatpush1.msra.mxu0 %v590
    %620 = vmatprep.subr.mxu0 0.0
    %621 = vmatpush1.msra.mxu0 %v591
    %622 = vmatprep.subr.mxu0 0.0
    %623 = vmatpush1.msra.mxu0 %v592
    %624 = vmatprep.subr.mxu0 0.0
    %625 = vmatpush1.msra.mxu0 %v593
    %626 = vmatprep.subr.mxu0 0.0
    %627 = vmatpush1.msra.mxu0 0.0
    %628 = vmatprep.subr.mxu0 0.0
    %629 = vmatpush1.msra.mxu0 0.0
    %630 = vmatprep.subr.mxu0 0.0
    %631 = vmatpush1.msra.mxu0 0.0
    %632 = vmatprep.subr.mxu0 0.0
    %633 = vmatpush1.msra.mxu0 0.0
    %634 = vmatprep.subr.mxu0 0.0
    %635 = vmatpush1.msra.mxu0 0.0
    %636 = vmatprep.subr.mxu0 0.0
    %637 = vmatpush1.msra.mxu0 0.0
    %638 = vmatprep.subr.mxu0 0.0
    %639 = vmatpush1.msra.mxu0 0.0
    %640 = vmatprep.subr.mxu0 0.0
    %641 = vmatpush1.msra.mxu0 0.0
    %642 = vmatprep.subr.mxu0 0.0
    %643 = vmatpush1.msra.mxu0 0.0
    %644 = vmatprep.subr.mxu0 0.0
    %645 = vmatpush1.msra.mxu0 0.0
    %646 = vmatprep.subr.mxu0 0.0
    %647 = vmatpush1.msra.mxu0 0.0
    %648 = vmatprep.subr.mxu0 0.0
    %649 = vmatpush1.msra.mxu0 0.0
    %650 = vmatprep.subr.mxu0 0.0
    %651 = vmatpush1.msra.mxu0 0.0
    %652 = vmatprep.subr.mxu0 0.0
    %653 = vmatpush1.msra.mxu0 0.0
    %654 = vmatprep.subr.mxu0 0.0
    %655 = vmatpush1.msra.mxu0 0.0
    %656 = vmatprep.subr.mxu0 0.0
    %657 = vmatpush1.msra.mxu0 0.0
    %658 = vmatprep.mubr.f32.mxu0 0.0
    %659 = vmatmul.mubr.f32.gmra.mrb[0].mxu0 %v562
    %v660 = vpop.f32.mrb[0].mxu0
    %v661 = vadd.f32 0.0, %v660
    %v662 = vpop.f32.mrb[0].mxu0
    %663 = vmatprep.mubr.f32.mxu0 0.0
    %664 = vmatmul.mubr.f32.gmra.mrb[0].mxu0 %v563
    %v665 = vpop.f32.mrb[0].mxu0
    %v666 = vadd.f32 0.0, %v665
    %v667 = vpop.f32.mrb[0].mxu0
    %668 = vmatprep.mubr.f32.mxu0 0.0
    %669 = vmatmul.mubr.f32.gmra.mrb[0].mxu0 %v564
    %v670 = vpop.f32.mrb[0].mxu0
    %v671 = vadd.f32 0.0, %v670
    %v672 = vpop.f32.mrb[0].mxu0
    %673 = vmatprep.mubr.f32.mxu0 0.0
    %674 = vmatmul.mubr.f32.gmra.mrb[0].mxu0 %v565
    %v675 = vpop.f32.mrb[0].mxu0
    %v676 = vadd.f32 0.0, %v675
    %v677 = vpop.f32.mrb[0].mxu0
    %678 = vmatprep.mubr.f32.mxu0 0.0
    %679 = vmatmul.mubr.f32.gmra.mrb[0].mxu0 %v566
    %v680 = vpop.f32.mrb[0].mxu0
    %v681 = vadd.f32 0.0, %v680
    %v682 = vpop.f32.mrb[0].mxu0
    %683 = vmatprep.mubr.f32.mxu0 0.0
    %684 = vmatmul.mubr.f32.gmra.mrb[0].mxu0 %v567
    %v685 = vpop.f32.mrb[0].mxu0
    %v686 = vadd.f32 0.0, %v685
    %v687 = vpop.f32.mrb[0].mxu0
    %688 = vmatprep.mubr.f32.mxu0 0.0
    %689 = vmatmul.mubr.f32.gmra.mrb[0].mxu0 %v568
    %v690 = vpop.f32.mrb[0].mxu0
    %v691 = vadd.f32 0.0, %v690
    %v692 = vpop.f32.mrb[0].mxu0
    %693 = vmatprep.mubr.f32.mxu0 0.0
    %694 = vmatmul.mubr.f32.gmra.mrb[0].mxu0 %v569
    %v695 = vpop.f32.mrb[0].mxu0
    %v696 = vadd.f32 0.0, %v695
    %v697 = vpop.f32.mrb[0].mxu0
    %698 = vmatprep.mubr.f32.mxu0 0.0
    %699 = vmatmul.mubr.f32.gmra.mrb[0].mxu0 %v570
    %v700 = vpop.f32.mrb[0].mxu0
    %v701 = vadd.f32 0.0, %v700
    %v702 = vpop.f32.mrb[0].mxu0
    %703 = vmatprep.mubr.f32.mxu0 0.0
    %704 = vmatmul.mubr.f32.gmra.mrb[0].mxu0 %v571
    %v705 = vpop.f32.mrb[0].mxu0
    %v706 = vadd.f32 0.0, %v705
    %v707 = vpop.f32.mrb[0].mxu0
    %708 = vmatprep.mubr.f32.mxu0 0.0
    %709 = vmatmul.mubr.f32.gmra.mrb[0].mxu0 %v572
    %v710 = vpop.f32.mrb[0].mxu0
    %v711 = vadd.f32 0.0, %v710
    %v712 = vpop.f32.mrb[0].mxu0
    %713 = vmatprep.mubr.f32.mxu0 0.0
    %714 = vmatmul.mubr.f32.gmra.mrb[0].mxu0 %v573
    %v715 = vpop.f32.mrb[0].mxu0
    %v716 = vadd.f32 0.0, %v715
    %v717 = vpop.f32.mrb[0].mxu0
    %718 = vmatprep.mubr.f32.mxu0 0.0
    %719 = vmatmul.mubr.f32.gmra.mrb[0].mxu0 %v574
    %v720 = vpop.f32.mrb[0].mxu0
    %v721 = vadd.f32 0.0, %v720
    %v722 = vpop.f32.mrb[0].mxu0
    %723 = vmatprep.mubr.f32.mxu0 0.0
    %724 = vmatmul.mubr.f32.gmra.mrb[0].mxu0 %v575
    %v725 = vpop.f32.mrb[0].mxu0
    %v726 = vadd.f32 0.0, %v725
    %v727 = vpop.f32.mrb[0].mxu0
    %728 = vmatprep.mubr.f32.mxu0 0.0
    %729 = vmatmul.mubr.f32.gmra.mrb[0].mxu0 %v576
    %v730 = vpop.f32.mrb[0].mxu0
    %v731 = vadd.f32 0.0, %v730
    %v732 = vpop.f32.mrb[0].mxu0
    %733 = vmatprep.mubr.f32.mxu0 0.0
    %734 = vmatmul.mubr.f32.gmra.mrb[0].mxu0 %v577
    %v735 = vpop.f32.mrb[0].mxu0
    %v736 = vadd.f32 0.0, %v735
    %v737 = vpop.f32.mrb[0].mxu0
    %738 = vdwg.mxu0
    %v739 = vmax.f32 %v661, 0.0
    %v740 = vmax.f32 %v666, 0.0
    %v741 = vmax.f32 %v671, 0.0
    %v742 = vmax.f32 %v676, 0.0
    %v743 = vmax.f32 %v681, 0.0
    %v744 = vmax.f32 %v686, 0.0
    %v745 = vmax.f32 %v691, 0.0
    %v746 = vmax.f32 %v696, 0.0
    %v747 = vmax.f32 %v701, 0.0
    %v748 = vmax.f32 %v706, 0.0
    %v749 = vmax.f32 %v711, 0.0
    %v750 = vmax.f32 %v716, 0.0
    %v751 = vmax.f32 %v721, 0.0
    %v752 = vmax.f32 %v726, 0.0
    %v753 = vmax.f32 %v731, 0.0
    %v754 = vmax.f32 %v736, 0.0
    %755 = vst [vmem:[#allocation2] sm:$0xff] %v739
    %756 = vst [vmem:[#allocation2 + $0x8] sm:$0xff] %v740
    %757 = vst [vmem:[#allocation2 + $0x10] sm:$0xff] %v741
    %758 = vst [vmem:[#allocation2 + $0x18] sm:$0xff] %v742
    %759 = vst [vmem:[#allocation2 + $0x20] sm:$0xff] %v743
    %760 = vst [vmem:[#allocation2 + $0x28] sm:$0xff] %v744
    %761 = vst [vmem:[#allocation2 + $0x30] sm:$0xff] %v745
    %762 = vst [vmem:[#allocation2 + $0x38] sm:$0xff] %v746
    %763 = vst [vmem:[#allocation2 + $0x40] sm:$0xff] %v747
    %764 = vst [vmem:[#allocation2 + $0x48] sm:$0xff] %v748
    %765 = vst [vmem:[#allocation2 + $0x50] sm:$0xff] %v749
    %766 = vst [vmem:[#allocation2 + $0x58] sm:$0xff] %v750
    %767 = vst [vmem:[#allocation2 + $0x60] sm:$0xff] %v751
    %768 = vst [vmem:[#allocation2 + $0x68] sm:$0xff] %v752
    %769 = vst [vmem:[#allocation2 + $0x70] sm:$0xff] %v753
    %770 = vst [vmem:[#allocation2 + $0x78] sm:$0xff] %v754
    %v771 = vld [vmem:[#allocation2] sm:$0xff]
    %v772 = vld [vmem:[#allocation2 + $0x8] sm:$0xff]
    %v773 = vld [vmem:[#allocation2 + $0x10] sm:$0xff]
    %v774 = vld [vmem:[#allocation2 + $0x18] sm:$0xff]
    %v775 = vld [vmem:[#allocation2 + $0x20] sm:$0xff]
    %v776 = vld [vmem:[#allocation2 + $0x28] sm:$0xff]
    %v777 = vld [vmem:[#allocation2 + $0x30] sm:$0xff]
    %v778 = vld [vmem:[#allocation2 + $0x38] sm:$0xff]
    %v779 = vld [vmem:[#allocation2 + $0x40] sm:$0xff]
    %v780 = vld [vmem:[#allocation2 + $0x48] sm:$0xff]
    %v781 = vld [vmem:[#allocation2 + $0x50] sm:$0xff]
    %v782 = vld [vmem:[#allocation2 + $0x58] sm:$0xff]
    %v783 = vld [vmem:[#allocation2 + $0x60] sm:$0xff]
    %v784 = vld [vmem:[#allocation2 + $0x68] sm:$0xff]
    %v785 = vld [vmem:[#allocation2 + $0x70] sm:$0xff]
    %v786 = vld [vmem:[#allocation2 + $0x78] sm:$0xff]
    %v787 = vpack.c.bf16 %v772, %v771
    %v788 = vpack.c.bf16 %v774, %v773
    %v789 = vpack.c.bf16 %v776, %v775
    %v790 = vpack.c.bf16 %v778, %v777
    %v791 = vpack.c.bf16 %v780, %v779
    %v792 = vpack.c.bf16 %v782, %v781
    %v793 = vpack.c.bf16 %v784, %v783
    %v794 = vpack.c.bf16 %v786, %v785
    %795 = vmatprep.subr.bf16.mxu0 0
    %796 = vmatpush1.bf16.msra.mxu0 %v787
    %797 = vmatprep.subr.bf16.mxu0 0
    %798 = vmatpush1.bf16.msra.mxu0 %v788
    %799 = vmatprep.subr.bf16.mxu0 0
    %800 = vmatpush1.bf16.msra.mxu0 %v789
    %801 = vmatprep.subr.bf16.mxu0 0
    %802 = vmatpush1.bf16.msra.mxu0 %v790
    %803 = vmatprep.subr.bf16.mxu0 0
    %804 = vmatpush1.bf16.msra.mxu0 %v791
    %805 = vmatprep.subr.bf16.mxu0 0
    %806 = vmatpush1.bf16.msra.mxu0 %v792
    %807 = vmatprep.subr.bf16.mxu0 0
    %808 = vmatpush1.bf16.msra.mxu0 %v793
    %809 = vmatprep.subr.bf16.mxu0 0
    %810 = vmatpush1.bf16.msra.mxu0 %v794
    %811 = vmatprep.subr.bf16.mxu0 0
    %812 = vmatpush1.bf16.msra.mxu0 0
    %813 = vmatprep.subr.bf16.mxu0 0
    %814 = vmatpush1.bf16.msra.mxu0 0
    %815 = vmatprep.subr.bf16.mxu0 0
    %816 = vmatpush1.bf16.msra.mxu0 0
    %817 = vmatprep.subr.bf16.mxu0 0
    %818 = vmatpush1.bf16.msra.mxu0 0
    %819 = vmatprep.subr.bf16.mxu0 0
    %820 = vmatpush1.bf16.msra.mxu0 0
    %821 = vmatprep.subr.bf16.mxu0 0
    %822 = vmatpush1.bf16.msra.mxu0 0
    %823 = vmatprep.subr.bf16.mxu0 0
    %824 = vmatpush1.bf16.msra.mxu0 0
    %825 = vmatprep.subr.bf16.mxu0 0
    %826 = vmatpush1.bf16.msra.mxu0 0
    %827 = vmatprep.mubr.bf16.mxu0 0
    %828 = vmatmul.mubr.bf16.gmra.mrb[0].mxu0 %v401
    %v829 = vpop.f32.mrb[0].mxu0
    %v830 = vadd.f32 0.0, %v829
    %v831 = vpop.f32.mrb[0].mxu0
    %v832 = vpop.f32.mrb[0].mxu0
    %v833 = vadd.f32 0.0, %v832
    %v834 = vpop.f32.mrb[0].mxu0
    %835 = vmatprep.mubr.bf16.mxu0 0
    %836 = vmatmul.mubr.bf16.gmra.mrb[0].mxu0 %v402
    %v837 = vpop.f32.mrb[0].mxu0
    %v838 = vadd.f32 0.0, %v837
    %v839 = vpop.f32.mrb[0].mxu0
    %v840 = vpop.f32.mrb[0].mxu0
    %v841 = vadd.f32 0.0, %v840
    %v842 = vpop.f32.mrb[0].mxu0
    %843 = vmatprep.mubr.bf16.mxu0 0
    %844 = vmatmul.mubr.bf16.gmra.mrb[0].mxu0 %v403
    %v845 = vpop.f32.mrb[0].mxu0
    %v846 = vadd.f32 0.0, %v845
    %v847 = vpop.f32.mrb[0].mxu0
    %v848 = vpop.f32.mrb[0].mxu0
    %v849 = vadd.f32 0.0, %v848
    %v850 = vpop.f32.mrb[0].mxu0
    %851 = vmatprep.mubr.bf16.mxu0 0
    %852 = vmatmul.mubr.bf16.gmra.mrb[0].mxu0 %v404
    %v853 = vpop.f32.mrb[0].mxu0
    %v854 = vadd.f32 0.0, %v853
    %v855 = vpop.f32.mrb[0].mxu0
    %v856 = vpop.f32.mrb[0].mxu0
    %v857 = vadd.f32 0.0, %v856
    %v858 = vpop.f32.mrb[0].mxu0
    %859 = vmatprep.mubr.bf16.mxu0 0
    %860 = vmatmul.mubr.bf16.gmra.mrb[0].mxu0 %v405
    %v861 = vpop.f32.mrb[0].mxu0
    %v862 = vadd.f32 0.0, %v861
    %v863 = vpop.f32.mrb[0].mxu0
    %v864 = vpop.f32.mrb[0].mxu0
    %v865 = vadd.f32 0.0, %v864
    %v866 = vpop.f32.mrb[0].mxu0
    %867 = vmatprep.mubr.bf16.mxu0 0
    %868 = vmatmul.mubr.bf16.gmra.mrb[0].mxu0 %v406
    %v869 = vpop.f32.mrb[0].mxu0
    %v870 = vadd.f32 0.0, %v869
    %v871 = vpop.f32.mrb[0].mxu0
    %v872 = vpop.f32.mrb[0].mxu0
    %v873 = vadd.f32 0.0, %v872
    %v874 = vpop.f32.mrb[0].mxu0
    %875 = vmatprep.mubr.bf16.mxu0 0
    %876 = vmatmul.mubr.bf16.gmra.mrb[0].mxu0 %v407
    %v877 = vpop.f32.mrb[0].mxu0
    %v878 = vadd.f32 0.0, %v877
    %v879 = vpop.f32.mrb[0].mxu0
    %v880 = vpop.f32.mrb[0].mxu0
    %v881 = vadd.f32 0.0, %v880
    %v882 = vpop.f32.mrb[0].mxu0
    %883 = vmatprep.mubr.bf16.mxu0 0
    %884 = vmatmul.mubr.bf16.gmra.mrb[0].mxu0 %v408
    %v885 = vpop.f32.mrb[0].mxu0
    %v886 = vadd.f32 0.0, %v885
    %v887 = vpop.f32.mrb[0].mxu0
    %v888 = vpop.f32.mrb[0].mxu0
    %v889 = vadd.f32 0.0, %v888
    %v890 = vpop.f32.mrb[0].mxu0
    %891 = vdwg.mxu0
    %v892 = vmul.f32 %v830, 0.9
    %v893 = vmul.f32 %v833, 0.9
    %v894 = vmul.f32 %v838, 0.9
    %v895 = vmul.f32 %v841, 0.9
    %v896 = vmul.f32 %v846, 0.9
    %v897 = vmul.f32 %v849, 0.9
    %v898 = vmul.f32 %v854, 0.9
    %v899 = vmul.f32 %v857, 0.9
    %v900 = vmul.f32 %v862, 0.9
    %v901 = vmul.f32 %v865, 0.9
    %v902 = vmul.f32 %v870, 0.9
    %v903 = vmul.f32 %v873, 0.9
    %v904 = vmul.f32 %v878, 0.9
    %v905 = vmul.f32 %v881, 0.9
    %v906 = vmul.f32 %v886, 0.9
    %v907 = vmul.f32 %v889, 0.9
    %v908 = vld [vmem:[#allocation3] sm:$0xff]
    %v909 = vld [vmem:[#allocation3 + $0x8] sm:$0xff]
    %v910 = vld [vmem:[#allocation3 + $0x10] sm:$0xff]
    %v911 = vld [vmem:[#allocation3 + $0x18] sm:$0xff]
    %v912 = vld [vmem:[#allocation3 + $0x20] sm:$0xff]
    %v913 = vld [vmem:[#allocation3 + $0x28] sm:$0xff]
    %v914 = vld [vmem:[#allocation3 + $0x30] sm:$0xff]
    %v915 = vld [vmem:[#allocation3 + $0x38] sm:$0xff]
    %v916 = vld [vmem:[#allocation3 + $0x40] sm:$0xff]
    %v917 = vld [vmem:[#allocation3 + $0x48] sm:$0xff]
    %v918 = vld [vmem:[#allocation3 + $0x50] sm:$0xff]
    %v919 = vld [vmem:[#allocation3 + $0x58] sm:$0xff]
    %v920 = vld [vmem:[#allocation3 + $0x60] sm:$0xff]
    %v921 = vld [vmem:[#allocation3 + $0x68] sm:$0xff]
    %v922 = vld [vmem:[#allocation3 + $0x70] sm:$0xff]
    %v923 = vld [vmem:[#allocation3 + $0x78] sm:$0xff]
    %v924 = vmul.f32 %v908, 0.1
    %v925 = vmul.f32 %v909, 0.1
    %v926 = vmul.f32 %v910, 0.1
    %v927 = vmul.f32 %v911, 0.1
    %v928 = vmul.f32 %v912, 0.1
    %v929 = vmul.f32 %v913, 0.1
    %v930 = vmul.f32 %v914, 0.1
    %v931 = vmul.f32 %v915, 0.1
    %v932 = vmul.f32 %v916, 0.1
    %v933 = vmul.f32 %v917, 0.1
    %v934 = vmul.f32 %v918, 0.1
    %v935 = vmul.f32 %v919, 0.1
    %v936 = vmul.f32 %v920, 0.1
    %v937 = vmul.f32 %v921, 0.1
    %v938 = vmul.f32 %v922, 0.1
    %v939 = vmul.f32 %v923, 0.1
    %v940 = vadd.f32 %v892, %v924
    %v941 = vadd.f32 %v893, %v925
    %v942 = vadd.f32 %v894, %v926
    %v943 = vadd.f32 %v895, %v927
    %v944 = vadd.f32 %v896, %v928
    %v945 = vadd.f32 %v897, %v929
    %v946 = vadd.f32 %v898, %v930
    %v947 = vadd.f32 %v899, %v931
    %v948 = vadd.f32 %v900, %v932
    %v949 = vadd.f32 %v901, %v933
    %v950 = vadd.f32 %v902, %v934
    %v951 = vadd.f32 %v903, %v935
    %v952 = vadd.f32 %v904, %v936
    %v953 = vadd.f32 %v905, %v937
    %v954 = vadd.f32 %v906, %v938
    %v955 = vadd.f32 %v907, %v939
    %s956 = scalar_lea.vmem [#allocation7], 128
    %v957 = vld [vmem:[%s956] sm:$0xff]
    %v958 = vld [vmem:[%s956 + $0x8] sm:$0xff]
    %v959 = vld [vmem:[%s956 + $0x10] sm:$0xff]
    %v960 = vld [vmem:[%s956 + $0x18] sm:$0xff]
    %v961 = vld [vmem:[%s956 + $0x20] sm:$0xff]
    %v962 = vld [vmem:[%s956 + $0x28] sm:$0xff]
    %v963 = vld [vmem:[%s956 + $0x30] sm:$0xff]
    %v964 = vld [vmem:[%s956 + $0x38] sm:$0xff]
    %v965 = vld [vmem:[%s956 + $0x40] sm:$0xff]
    %v966 = vld [vmem:[%s956 + $0x48] sm:$0xff]
    %v967 = vld [vmem:[%s956 + $0x50] sm:$0xff]
    %v968 = vld [vmem:[%s956 + $0x58] sm:$0xff]
    %v969 = vld [vmem:[%s956 + $0x60] sm:$0xff]
    %v970 = vld [vmem:[%s956 + $0x68] sm:$0xff]
    %v971 = vld [vmem:[%s956 + $0x70] sm:$0xff]
    %v972 = vld [vmem:[%s956 + $0x78] sm:$0xff]
    %973 = vmatprep.subr.mxu0 0.0
    %974 = vmatpush1.msra.mxu0 %v957
    %975 = vmatprep.subr.mxu0 0.0
    %976 = vmatpush1.msra.mxu0 %v958
    %977 = vmatprep.subr.mxu0 0.0
    %978 = vmatpush1.msra.mxu0 %v959
    %979 = vmatprep.subr.mxu0 0.0
    %980 = vmatpush1.msra.mxu0 %v960
    %981 = vmatprep.subr.mxu0 0.0
    %982 = vmatpush1.msra.mxu0 %v961
    %983 = vmatprep.subr.mxu0 0.0
    %984 = vmatpush1.msra.mxu0 %v962
    %985 = vmatprep.subr.mxu0 0.0
    %986 = vmatpush1.msra.mxu0 %v963
    %987 = vmatprep.subr.mxu0 0.0
    %988 = vmatpush1.msra.mxu0 %v964
    %989 = vmatprep.subr.mxu0 0.0
    %990 = vmatpush1.msra.mxu0 %v965
    %991 = vmatprep.subr.mxu0 0.0
    %992 = vmatpush1.msra.mxu0 %v966
    %993 = vmatprep.subr.mxu0 0.0
    %994 = vmatpush1.msra.mxu0 %v967
    %995 = vmatprep.subr.mxu0 0.0
    %996 = vmatpush1.msra.mxu0 %v968
    %997 = vmatprep.subr.mxu0 0.0
    %998 = vmatpush1.msra.mxu0 %v969
    %999 = vmatprep.subr.mxu0 0.0
    %1000 = vmatpush1.msra.mxu0 %v970
    %1001 = vmatprep.subr.mxu0 0.0
    %1002 = vmatpush1.msra.mxu0 %v971
    %1003 = vmatprep.subr.mxu0 0.0
    %1004 = vmatpush1.msra.mxu0 %v972
    %1005 = vmatprep.subr.mxu0 0.0
    %1006 = vmatpush1.msra.mxu0 0.0
    %1007 = vmatprep.subr.mxu0 0.0
    %1008 = vmatpush1.msra.mxu0 0.0
    %1009 = vmatprep.subr.mxu0 0.0
    %1010 = vmatpush1.msra.mxu0 0.0
    %1011 = vmatprep.subr.mxu0 0.0
    %1012 = vmatpush1.msra.mxu0 0.0
    %1013 = vmatprep.subr.mxu0 0.0
    %1014 = vmatpush1.msra.mxu0 0.0
    %1015 = vmatprep.subr.mxu0 0.0
    %1016 = vmatpush1.msra.mxu0 0.0
    %1017 = vmatprep.subr.mxu0 0.0
    %1018 = vmatpush1.msra.mxu0 0.0
    %1019 = vmatprep.subr.mxu0 0.0
    %1020 = vmatpush1.msra.mxu0 0.0
    %1021 = vmatprep.subr.mxu0 0.0
    %1022 = vmatpush1.msra.mxu0 0.0
    %1023 = vmatprep.subr.mxu0 0.0
    %1024 = vmatpush1.msra.mxu0 0.0
    %1025 = vmatprep.subr.mxu0 0.0
    %1026 = vmatpush1.msra.mxu0 0.0
    %1027 = vmatprep.subr.mxu0 0.0
    %1028 = vmatpush1.msra.mxu0 0.0
    %1029 = vmatprep.subr.mxu0 0.0
    %1030 = vmatpush1.msra.mxu0 0.0
    %1031 = vmatprep.subr.mxu0 0.0
    %1032 = vmatpush1.msra.mxu0 0.0
    %1033 = vmatprep.subr.mxu0 0.0
    %1034 = vmatpush1.msra.mxu0 0.0
    %1035 = vmatprep.subr.mxu0 0.0
    %1036 = vmatpush1.msra.mxu0 0.0
    %1037 = vmatprep.mubr.f32.mxu0 0.0
    %1038 = vmatmul.mubr.f32.gmra.mrb[0].mxu0 %v940
    %v1039 = vpop.f32.mrb[0].mxu0
    %v1040 = vadd.f32 0.0, %v1039
    %v1041 = vpop.f32.mrb[0].mxu0
    %1042 = vmatprep.mubr.f32.mxu0 0.0
    %1043 = vmatmul.mubr.f32.gmra.mrb[0].mxu0 %v941
    %v1044 = vpop.f32.mrb[0].mxu0
    %v1045 = vadd.f32 0.0, %v1044
    %v1046 = vpop.f32.mrb[0].mxu0
    %1047 = vmatprep.mubr.f32.mxu0 0.0
    %1048 = vmatmul.mubr.f32.gmra.mrb[0].mxu0 %v942
    %v1049 = vpop.f32.mrb[0].mxu0
    %v1050 = vadd.f32 0.0, %v1049
    %v1051 = vpop.f32.mrb[0].mxu0
    %1052 = vmatprep.mubr.f32.mxu0 0.0
    %1053 = vmatmul.mubr.f32.gmra.mrb[0].mxu0 %v943
    %v1054 = vpop.f32.mrb[0].mxu0
    %v1055 = vadd.f32 0.0, %v1054
    %v1056 = vpop.f32.mrb[0].mxu0
    %1057 = vmatprep.mubr.f32.mxu0 0.0
    %1058 = vmatmul.mubr.f32.gmra.mrb[0].mxu0 %v944
    %v1059 = vpop.f32.mrb[0].mxu0
    %v1060 = vadd.f32 0.0, %v1059
    %v1061 = vpop.f32.mrb[0].mxu0
    %1062 = vmatprep.mubr.f32.mxu0 0.0
    %1063 = vmatmul.mubr.f32.gmra.mrb[0].mxu0 %v945
    %v1064 = vpop.f32.mrb[0].mxu0
    %v1065 = vadd.f32 0.0, %v1064
    %v1066 = vpop.f32.mrb[0].mxu0
    %1067 = vmatprep.mubr.f32.mxu0 0.0
    %1068 = vmatmul.mubr.f32.gmra.mrb[0].mxu0 %v946
    %v1069 = vpop.f32.mrb[0].mxu0
    %v1070 = vadd.f32 0.0, %v1069
    %v1071 = vpop.f32.mrb[0].mxu0
    %1072 = vmatprep.mubr.f32.mxu0 0.0
    %1073 = vmatmul.mubr.f32.gmra.mrb[0].mxu0 %v947
    %v1074 = vpop.f32.mrb[0].mxu0
    %v1075 = vadd.f32 0.0, %v1074
    %v1076 = vpop.f32.mrb[0].mxu0
    %1077 = vmatprep.mubr.f32.mxu0 0.0
    %1078 = vmatmul.mubr.f32.gmra.mrb[0].mxu0 %v948
    %v1079 = vpop.f32.mrb[0].mxu0
    %v1080 = vadd.f32 0.0, %v1079
    %v1081 = vpop.f32.mrb[0].mxu0
    %1082 = vmatprep.mubr.f32.mxu0 0.0
    %1083 = vmatmul.mubr.f32.gmra.mrb[0].mxu0 %v949
    %v1084 = vpop.f32.mrb[0].mxu0
    %v1085 = vadd.f32 0.0, %v1084
    %v1086 = vpop.f32.mrb[0].mxu0
    %1087 = vmatprep.mubr.f32.mxu0 0.0
    %1088 = vmatmul.mubr.f32.gmra.mrb[0].mxu0 %v950
    %v1089 = vpop.f32.mrb[0].mxu0
    %v1090 = vadd.f32 0.0, %v1089
    %v1091 = vpop.f32.mrb[0].mxu0
    %1092 = vmatprep.mubr.f32.mxu0 0.0
    %1093 = vmatmul.mubr.f32.gmra.mrb[0].mxu0 %v951
    %v1094 = vpop.f32.mrb[0].mxu0
    %v1095 = vadd.f32 0.0, %v1094
    %v1096 = vpop.f32.mrb[0].mxu0
    %1097 = vmatprep.mubr.f32.mxu0 0.0
    %1098 = vmatmul.mubr.f32.gmra.mrb[0].mxu0 %v952
    %v1099 = vpop.f32.mrb[0].mxu0
    %v1100 = vadd.f32 0.0, %v1099
    %v1101 = vpop.f32.mrb[0].mxu0
    %1102 = vmatprep.mubr.f32.mxu0 0.0
    %1103 = vmatmul.mubr.f32.gmra.mrb[0].mxu0 %v953
    %v1104 = vpop.f32.mrb[0].mxu0
    %v1105 = vadd.f32 0.0, %v1104
    %v1106 = vpop.f32.mrb[0].mxu0
    %1107 = vmatprep.mubr.f32.mxu0 0.0
    %1108 = vmatmul.mubr.f32.gmra.mrb[0].mxu0 %v954
    %v1109 = vpop.f32.mrb[0].mxu0
    %v1110 = vadd.f32 0.0, %v1109
    %v1111 = vpop.f32.mrb[0].mxu0
    %1112 = vmatprep.mubr.f32.mxu0 0.0
    %1113 = vmatmul.mubr.f32.gmra.mrb[0].mxu0 %v955
    %v1114 = vpop.f32.mrb[0].mxu0
    %v1115 = vadd.f32 0.0, %v1114
    %v1116 = vpop.f32.mrb[0].mxu0
    %1117 = vdwg.mxu0
    %v1118 = vmax.f32 %v1040, 0.0
    %v1119 = vmax.f32 %v1045, 0.0
    %v1120 = vmax.f32 %v1050, 0.0
    %v1121 = vmax.f32 %v1055, 0.0
    %v1122 = vmax.f32 %v1060, 0.0
    %v1123 = vmax.f32 %v1065, 0.0
    %v1124 = vmax.f32 %v1070, 0.0
    %v1125 = vmax.f32 %v1075, 0.0
    %v1126 = vmax.f32 %v1080, 0.0
    %v1127 = vmax.f32 %v1085, 0.0
    %v1128 = vmax.f32 %v1090, 0.0
    %v1129 = vmax.f32 %v1095, 0.0
    %v1130 = vmax.f32 %v1100, 0.0
    %v1131 = vmax.f32 %v1105, 0.0
    %v1132 = vmax.f32 %v1110, 0.0
    %v1133 = vmax.f32 %v1115, 0.0
    %1134 = vst [vmem:[#allocation2] sm:$0xff] %v1118
    %1135 = vst [vmem:[#allocation2 + $0x8] sm:$0xff] %v1119
    %1136 = vst [vmem:[#allocation2 + $0x10] sm:$0xff] %v1120
    %1137 = vst [vmem:[#allocation2 + $0x18] sm:$0xff] %v1121
    %1138 = vst [vmem:[#allocation2 + $0x20] sm:$0xff] %v1122
    %1139 = vst [vmem:[#allocation2 + $0x28] sm:$0xff] %v1123
    %1140 = vst [vmem:[#allocation2 + $0x30] sm:$0xff] %v1124
    %1141 = vst [vmem:[#allocation2 + $0x38] sm:$0xff] %v1125
    %1142 = vst [vmem:[#allocation2 + $0x40] sm:$0xff] %v1126
    %1143 = vst [vmem:[#allocation2 + $0x48] sm:$0xff] %v1127
    %1144 = vst [vmem:[#allocation2 + $0x50] sm:$0xff] %v1128
    %1145 = vst [vmem:[#allocation2 + $0x58] sm:$0xff] %v1129
    %1146 = vst [vmem:[#allocation2 + $0x60] sm:$0xff] %v1130
    %1147 = vst [vmem:[#allocation2 + $0x68] sm:$0xff] %v1131
    %1148 = vst [vmem:[#allocation2 + $0x70] sm:$0xff] %v1132
    %1149 = vst [vmem:[#allocation2 + $0x78] sm:$0xff] %v1133
    %v1150 = vld [vmem:[#allocation2] sm:$0xff]
    %v1151 = vld [vmem:[#allocation2 + $0x8] sm:$0xff]
    %v1152 = vld [vmem:[#allocation2 + $0x10] sm:$0xff]
    %v1153 = vld [vmem:[#allocation2 + $0x18] sm:$0xff]
    %v1154 = vld [vmem:[#allocation2 + $0x20] sm:$0xff]
    %v1155 = vld [vmem:[#allocation2 + $0x28] sm:$0xff]
    %v1156 = vld [vmem:[#allocation2 + $0x30] sm:$0xff]
    %v1157 = vld [vmem:[#allocation2 + $0x38] sm:$0xff]
    %v1158 = vld [vmem:[#allocation2 + $0x40] sm:$0xff]
    %v1159 = vld [vmem:[#allocation2 + $0x48] sm:$0xff]
    %v1160 = vld [vmem:[#allocation2 + $0x50] sm:$0xff]
    %v1161 = vld [vmem:[#allocation2 + $0x58] sm:$0xff]
    %v1162 = vld [vmem:[#allocation2 + $0x60] sm:$0xff]
    %v1163 = vld [vmem:[#allocation2 + $0x68] sm:$0xff]
    %v1164 = vld [vmem:[#allocation2 + $0x70] sm:$0xff]
    %v1165 = vld [vmem:[#allocation2 + $0x78] sm:$0xff]
    %v1166 = vld [vmem:[%s5] sm:$0xff]
    %v1167 = vld [vmem:[%s5 + $0x8] sm:$0xff]
    %v1168 = vld [vmem:[%s5 + $0x10] sm:$0xff]
    %v1169 = vld [vmem:[%s5 + $0x18] sm:$0xff]
    %v1170 = vld [vmem:[%s5 + $0x20] sm:$0xff]
    %v1171 = vld [vmem:[%s5 + $0x28] sm:$0xff]
    %v1172 = vld [vmem:[%s5 + $0x30] sm:$0xff]
    %v1173 = vld [vmem:[%s5 + $0x38] sm:$0xff]
    %v1174 = vld [vmem:[%s5 + $0x40] sm:$0xff]
    %v1175 = vld [vmem:[%s5 + $0x48] sm:$0xff]
    %v1176 = vld [vmem:[%s5 + $0x50] sm:$0xff]
    %v1177 = vld [vmem:[%s5 + $0x58] sm:$0xff]
    %v1178 = vld [vmem:[%s5 + $0x60] sm:$0xff]
    %v1179 = vld [vmem:[%s5 + $0x68] sm:$0xff]
    %v1180 = vld [vmem:[%s5 + $0x70] sm:$0xff]
    %v1181 = vld [vmem:[%s5 + $0x78] sm:$0xff]
    %v1182 = vld [vmem:[%s6] sm:$0x1]
    %v1184 = vlaneseq
    %v1185 = vshrl.u32 %v1184, 7
    %v1186 = vsub.s32 0, %v1185
    %v1187 = vrot.slane %v1182, %v1186
    %1189 = vmatprep.subr.mxu0 0.0
    %1190 = vmatpush1.msra.mxu0 %v1166
    %1191 = vmatprep.subr.mxu0 0.0
    %1192 = vmatpush1.msra.mxu0 %v1167
    %1193 = vmatprep.subr.mxu0 0.0
    %1194 = vmatpush1.msra.mxu0 %v1168
    %1195 = vmatprep.subr.mxu0 0.0
    %1196 = vmatpush1.msra.mxu0 %v1169
    %1197 = vmatprep.subr.mxu0 0.0
    %1198 = vmatpush1.msra.mxu0 %v1170
    %1199 = vmatprep.subr.mxu0 0.0
    %1200 = vmatpush1.msra.mxu0 %v1171
    %1201 = vmatprep.subr.mxu0 0.0
    %1202 = vmatpush1.msra.mxu0 %v1172
    %1203 = vmatprep.subr.mxu0 0.0
    %1204 = vmatpush1.msra.mxu0 %v1173
    %1205 = vmatprep.subr.mxu0 0.0
    %1206 = vmatpush1.msra.mxu0 %v1174
    %1207 = vmatprep.subr.mxu0 0.0
    %1208 = vmatpush1.msra.mxu0 %v1175
    %1209 = vmatprep.subr.mxu0 0.0
    %1210 = vmatpush1.msra.mxu0 %v1176
    %1211 = vmatprep.subr.mxu0 0.0
    %1212 = vmatpush1.msra.mxu0 %v1177
    %1213 = vmatprep.subr.mxu0 0.0
    %1214 = vmatpush1.msra.mxu0 %v1178
    %1215 = vmatprep.subr.mxu0 0.0
    %1216 = vmatpush1.msra.mxu0 %v1179
    %1217 = vmatprep.subr.mxu0 0.0
    %1218 = vmatpush1.msra.mxu0 %v1180
    %1219 = vmatprep.subr.mxu0 0.0
    %1220 = vmatpush1.msra.mxu0 %v1181
    %1221 = vmatprep.subr.mxu0 0.0
    %1222 = vmatpush1.msra.mxu0 0.0
    %1223 = vmatprep.subr.mxu0 0.0
    %1224 = vmatpush1.msra.mxu0 0.0
    %1225 = vmatprep.subr.mxu0 0.0
    %1226 = vmatpush1.msra.mxu0 0.0
    %1227 = vmatprep.subr.mxu0 0.0
    %1228 = vmatpush1.msra.mxu0 0.0
    %1229 = vmatprep.subr.mxu0 0.0
    %1230 = vmatpush1.msra.mxu0 0.0
    %1231 = vmatprep.subr.mxu0 0.0
    %1232 = vmatpush1.msra.mxu0 0.0
    %1233 = vmatprep.subr.mxu0 0.0
    %1234 = vmatpush1.msra.mxu0 0.0
    %1235 = vmatprep.subr.mxu0 0.0
    %1236 = vmatpush1.msra.mxu0 0.0
    %1237 = vmatprep.subr.mxu0 0.0
    %1238 = vmatpush1.msra.mxu0 0.0
    %1239 = vmatprep.subr.mxu0 0.0
    %1240 = vmatpush1.msra.mxu0 0.0
    %1241 = vmatprep.subr.mxu0 0.0
    %1242 = vmatpush1.msra.mxu0 0.0
    %1243 = vmatprep.subr.mxu0 0.0
    %1244 = vmatpush1.msra.mxu0 0.0
    %1245 = vmatprep.subr.mxu0 0.0
    %1246 = vmatpush1.msra.mxu0 0.0
    %1247 = vmatprep.subr.mxu0 0.0
    %1248 = vmatpush1.msra.mxu0 0.0
    %1249 = vmatprep.subr.mxu0 0.0
    %1250 = vmatpush1.msra.mxu0 0.0
    %1251 = vmatprep.subr.mxu0 0.0
    %1252 = vmatpush1.msra.mxu0 0.0
    %1253 = vmatprep.mubr.f32.mxu0 0.0
    %1254 = vmatmul.mubr.f32.gmra.mrb[0].mxu0 %v1150
    %v1255 = vpop.f32.mrb[0].mxu0
    %v1256 = vadd.f32 %v1187, %v1255
    %v1257 = vpop.f32.mrb[0].mxu0
    %1258 = vmatprep.mubr.f32.mxu0 0.0
    %1259 = vmatmul.mubr.f32.gmra.mrb[0].mxu0 %v1151
    %v1260 = vpop.f32.mrb[0].mxu0
    %v1261 = vadd.f32 %v1187, %v1260
    %v1262 = vpop.f32.mrb[0].mxu0
    %1263 = vmatprep.mubr.f32.mxu0 0.0
    %1264 = vmatmul.mubr.f32.gmra.mrb[0].mxu0 %v1152
    %v1265 = vpop.f32.mrb[0].mxu0
    %v1266 = vadd.f32 %v1187, %v1265
    %v1267 = vpop.f32.mrb[0].mxu0
    %1268 = vmatprep.mubr.f32.mxu0 0.0
    %1269 = vmatmul.mubr.f32.gmra.mrb[0].mxu0 %v1153
    %v1270 = vpop.f32.mrb[0].mxu0
    %v1271 = vadd.f32 %v1187, %v1270
    %v1272 = vpop.f32.mrb[0].mxu0
    %1273 = vmatprep.mubr.f32.mxu0 0.0
    %1274 = vmatmul.mubr.f32.gmra.mrb[0].mxu0 %v1154
    %v1275 = vpop.f32.mrb[0].mxu0
    %v1276 = vadd.f32 %v1187, %v1275
    %v1277 = vpop.f32.mrb[0].mxu0
    %1278 = vmatprep.mubr.f32.mxu0 0.0
    %1279 = vmatmul.mubr.f32.gmra.mrb[0].mxu0 %v1155
    %v1280 = vpop.f32.mrb[0].mxu0
    %v1281 = vadd.f32 %v1187, %v1280
    %v1282 = vpop.f32.mrb[0].mxu0
    %1283 = vmatprep.mubr.f32.mxu0 0.0
    %1284 = vmatmul.mubr.f32.gmra.mrb[0].mxu0 %v1156
    %v1285 = vpop.f32.mrb[0].mxu0
    %v1286 = vadd.f32 %v1187, %v1285
    %v1287 = vpop.f32.mrb[0].mxu0
    %1288 = vmatprep.mubr.f32.mxu0 0.0
    %1289 = vmatmul.mubr.f32.gmra.mrb[0].mxu0 %v1157
    %v1290 = vpop.f32.mrb[0].mxu0
    %v1291 = vadd.f32 %v1187, %v1290
    %v1292 = vpop.f32.mrb[0].mxu0
    %1293 = vmatprep.mubr.f32.mxu0 0.0
    %1294 = vmatmul.mubr.f32.gmra.mrb[0].mxu0 %v1158
    %v1295 = vpop.f32.mrb[0].mxu0
    %v1296 = vadd.f32 %v1187, %v1295
    %v1297 = vpop.f32.mrb[0].mxu0
    %1298 = vmatprep.mubr.f32.mxu0 0.0
    %1299 = vmatmul.mubr.f32.gmra.mrb[0].mxu0 %v1159
    %v1300 = vpop.f32.mrb[0].mxu0
    %v1301 = vadd.f32 %v1187, %v1300
    %v1302 = vpop.f32.mrb[0].mxu0
    %1303 = vmatprep.mubr.f32.mxu0 0.0
    %1304 = vmatmul.mubr.f32.gmra.mrb[0].mxu0 %v1160
    %v1305 = vpop.f32.mrb[0].mxu0
    %v1306 = vadd.f32 %v1187, %v1305
    %v1307 = vpop.f32.mrb[0].mxu0
    %1308 = vmatprep.mubr.f32.mxu0 0.0
    %1309 = vmatmul.mubr.f32.gmra.mrb[0].mxu0 %v1161
    %v1310 = vpop.f32.mrb[0].mxu0
    %v1311 = vadd.f32 %v1187, %v1310
    %v1312 = vpop.f32.mrb[0].mxu0
    %1313 = vmatprep.mubr.f32.mxu0 0.0
    %1314 = vmatmul.mubr.f32.gmra.mrb[0].mxu0 %v1162
    %v1315 = vpop.f32.mrb[0].mxu0
    %v1316 = vadd.f32 %v1187, %v1315
    %v1317 = vpop.f32.mrb[0].mxu0
    %1318 = vmatprep.mubr.f32.mxu0 0.0
    %1319 = vmatmul.mubr.f32.gmra.mrb[0].mxu0 %v1163
    %v1320 = vpop.f32.mrb[0].mxu0
    %v1321 = vadd.f32 %v1187, %v1320
    %v1322 = vpop.f32.mrb[0].mxu0
    %1323 = vmatprep.mubr.f32.mxu0 0.0
    %1324 = vmatmul.mubr.f32.gmra.mrb[0].mxu0 %v1164
    %v1325 = vpop.f32.mrb[0].mxu0
    %v1326 = vadd.f32 %v1187, %v1325
    %v1327 = vpop.f32.mrb[0].mxu0
    %1328 = vmatprep.mubr.f32.mxu0 0.0
    %1329 = vmatmul.mubr.f32.gmra.mrb[0].mxu0 %v1165
    %v1330 = vpop.f32.mrb[0].mxu0
    %v1331 = vadd.f32 %v1187, %v1330
    %v1332 = vpop.f32.mrb[0].mxu0
    %1333 = vdwg.mxu0
    %v1334 = vlaneseq
    %v1335 = vand.u32 %v1334, 127
    %vm1336 = vcmp.lt.s32.totalorder %v1335, 16
    %v1337 = vsel %vm1336, %v1256, -inf
    %v1338 = vsel %vm1336, %v1261, -inf
    %v1339 = vsel %vm1336, %v1266, -inf
    %v1340 = vsel %vm1336, %v1271, -inf
    %v1341 = vsel %vm1336, %v1276, -inf
    %v1342 = vsel %vm1336, %v1281, -inf
    %v1343 = vsel %vm1336, %v1286, -inf
    %v1344 = vsel %vm1336, %v1291, -inf
    %v1345 = vsel %vm1336, %v1296, -inf
    %v1346 = vsel %vm1336, %v1301, -inf
    %v1347 = vsel %vm1336, %v1306, -inf
    %v1348 = vsel %vm1336, %v1311, -inf
    %v1349 = vsel %vm1336, %v1316, -inf
    %v1350 = vsel %vm1336, %v1321, -inf
    %v1351 = vsel %vm1336, %v1326, -inf
    %v1352 = vsel %vm1336, %v1331, -inf
    %1353 = vmax.xlane.f32.xlu0 %v1337
    %v1354 = vpop.xlane.xlu0 %1353
    %1355 = vmax.xlane.f32.xlu0 %v1338
    %v1356 = vpop.xlane.xlu0 %1355
    %1357 = vmax.xlane.f32.xlu0 %v1339
    %v1358 = vpop.xlane.xlu0 %1357
    %1359 = vmax.xlane.f32.xlu0 %v1340
    %v1360 = vpop.xlane.xlu0 %1359
    %1361 = vmax.xlane.f32.xlu0 %v1341
    %v1362 = vpop.xlane.xlu0 %1361
    %1363 = vmax.xlane.f32.xlu0 %v1342
    %v1364 = vpop.xlane.xlu0 %1363
    %1365 = vmax.xlane.f32.xlu0 %v1343
    %v1366 = vpop.xlane.xlu0 %1365
    %1367 = vmax.xlane.f32.xlu0 %v1344
    %v1368 = vpop.xlane.xlu0 %1367
    %1369 = vmax.xlane.f32.xlu0 %v1345
    %v1370 = vpop.xlane.xlu0 %1369
    %1371 = vmax.xlane.f32.xlu0 %v1346
    %v1372 = vpop.xlane.xlu0 %1371
    %1373 = vmax.xlane.f32.xlu0 %v1347
    %v1374 = vpop.xlane.xlu0 %1373
    %1375 = vmax.xlane.f32.xlu0 %v1348
    %v1376 = vpop.xlane.xlu0 %1375
    %1377 = vmax.xlane.f32.xlu0 %v1349
    %v1378 = vpop.xlane.xlu0 %1377
    %1379 = vmax.xlane.f32.xlu0 %v1350
    %v1380 = vpop.xlane.xlu0 %1379
    %1381 = vmax.xlane.f32.xlu0 %v1351
    %v1382 = vpop.xlane.xlu0 %1381
    %1383 = vmax.xlane.f32.xlu0 %v1352
    %v1384 = vpop.xlane.xlu0 %1383
    %v1385 = vsub.f32 %v1337, %v1354
    %v1386 = vsub.f32 %v1338, %v1356
    %v1387 = vsub.f32 %v1339, %v1358
    %v1388 = vsub.f32 %v1340, %v1360
    %v1389 = vsub.f32 %v1341, %v1362
    %v1390 = vsub.f32 %v1342, %v1364
    %v1391 = vsub.f32 %v1343, %v1366
    %v1392 = vsub.f32 %v1344, %v1368
    %v1393 = vsub.f32 %v1345, %v1370
    %v1394 = vsub.f32 %v1346, %v1372
    %v1395 = vsub.f32 %v1347, %v1374
    %v1396 = vsub.f32 %v1348, %v1376
    %v1397 = vsub.f32 %v1349, %v1378
    %v1398 = vsub.f32 %v1350, %v1380
    %v1399 = vsub.f32 %v1351, %v1382
    %v1400 = vsub.f32 %v1352, %v1384
    %v1401 = vmul.f32 %v1385, 1.442695
    %v1402 = vpow.pop %v1401
    %v1403 = vmul.f32 %v1386, 1.442695
    %v1404 = vpow.pop %v1403
    %v1405 = vmul.f32 %v1387, 1.442695
    %v1406 = vpow.pop %v1405
    %v1407 = vmul.f32 %v1388, 1.442695
    %v1408 = vpow.pop %v1407
    %v1409 = vmul.f32 %v1389, 1.442695
    %v1410 = vpow.pop %v1409
    %v1411 = vmul.f32 %v1390, 1.442695
    %v1412 = vpow.pop %v1411
    %v1413 = vmul.f32 %v1391, 1.442695
    %v1414 = vpow.pop %v1413
    %v1415 = vmul.f32 %v1392, 1.442695
    %v1416 = vpow.pop %v1415
    %v1417 = vmul.f32 %v1393, 1.442695
    %v1418 = vpow.pop %v1417
    %v1419 = vmul.f32 %v1394, 1.442695
    %v1420 = vpow.pop %v1419
    %v1421 = vmul.f32 %v1395, 1.442695
    %v1422 = vpow.pop %v1421
    %v1423 = vmul.f32 %v1396, 1.442695
    %v1424 = vpow.pop %v1423
    %v1425 = vmul.f32 %v1397, 1.442695
    %v1426 = vpow.pop %v1425
    %v1427 = vmul.f32 %v1398, 1.442695
    %v1428 = vpow.pop %v1427
    %v1429 = vmul.f32 %v1399, 1.442695
    %v1430 = vpow.pop %v1429
    %v1431 = vmul.f32 %v1400, 1.442695
    %v1432 = vpow.pop %v1431
    %1433 = vadd.xlane.f32.xlu0 %v1402
    %v1434 = vpop.xlane.xlu0 %1433
    %1435 = vadd.xlane.f32.xlu0 %v1404
    %v1436 = vpop.xlane.xlu0 %1435
    %1437 = vadd.xlane.f32.xlu0 %v1406
    %v1438 = vpop.xlane.xlu0 %1437
    %1439 = vadd.xlane.f32.xlu0 %v1408
    %v1440 = vpop.xlane.xlu0 %1439
    %1441 = vadd.xlane.f32.xlu0 %v1410
    %v1442 = vpop.xlane.xlu0 %1441
    %1443 = vadd.xlane.f32.xlu0 %v1412
    %v1444 = vpop.xlane.xlu0 %1443
    %1445 = vadd.xlane.f32.xlu0 %v1414
    %v1446 = vpop.xlane.xlu0 %1445
    %1447 = vadd.xlane.f32.xlu0 %v1416
    %v1448 = vpop.xlane.xlu0 %1447
    %1449 = vadd.xlane.f32.xlu0 %v1418
    %v1450 = vpop.xlane.xlu0 %1449
    %1451 = vadd.xlane.f32.xlu0 %v1420
    %v1452 = vpop.xlane.xlu0 %1451
    %1453 = vadd.xlane.f32.xlu0 %v1422
    %v1454 = vpop.xlane.xlu0 %1453
    %1455 = vadd.xlane.f32.xlu0 %v1424
    %v1456 = vpop.xlane.xlu0 %1455
    %1457 = vadd.xlane.f32.xlu0 %v1426
    %v1458 = vpop.xlane.xlu0 %1457
    %1459 = vadd.xlane.f32.xlu0 %v1428
    %v1460 = vpop.xlane.xlu0 %1459
    %1461 = vadd.xlane.f32.xlu0 %v1430
    %v1462 = vpop.xlane.xlu0 %1461
    %1463 = vadd.xlane.f32.xlu0 %v1432
    %v1464 = vpop.xlane.xlu0 %1463
    %v1465 = vlog2.pop %v1434
    %v1466 = vmul.f32 %v1465, 0.6931472
    %v1467 = vlog2.pop %v1436
    %v1468 = vmul.f32 %v1467, 0.6931472
    %v1469 = vlog2.pop %v1438
    %v1470 = vmul.f32 %v1469, 0.6931472
    %v1471 = vlog2.pop %v1440
    %v1472 = vmul.f32 %v1471, 0.6931472
    %v1473 = vlog2.pop %v1442
    %v1474 = vmul.f32 %v1473, 0.6931472
    %v1475 = vlog2.pop %v1444
    %v1476 = vmul.f32 %v1475, 0.6931472
    %v1477 = vlog2.pop %v1446
    %v1478 = vmul.f32 %v1477, 0.6931472
    %v1479 = vlog2.pop %v1448
    %v1480 = vmul.f32 %v1479, 0.6931472
    %v1481 = vlog2.pop %v1450
    %v1482 = vmul.f32 %v1481, 0.6931472
    %v1483 = vlog2.pop %v1452
    %v1484 = vmul.f32 %v1483, 0.6931472
    %v1485 = vlog2.pop %v1454
    %v1486 = vmul.f32 %v1485, 0.6931472
    %v1487 = vlog2.pop %v1456
    %v1488 = vmul.f32 %v1487, 0.6931472
    %v1489 = vlog2.pop %v1458
    %v1490 = vmul.f32 %v1489, 0.6931472
    %v1491 = vlog2.pop %v1460
    %v1492 = vmul.f32 %v1491, 0.6931472
    %v1493 = vlog2.pop %v1462
    %v1494 = vmul.f32 %v1493, 0.6931472
    %v1495 = vlog2.pop %v1464
    %v1496 = vmul.f32 %v1495, 0.6931472
    %v1497 = vadd.f32 %v1354, %v1466
    %v1498 = vadd.f32 %v1356, %v1468
    %v1499 = vadd.f32 %v1358, %v1470
    %v1500 = vadd.f32 %v1360, %v1472
    %v1501 = vadd.f32 %v1362, %v1474
    %v1502 = vadd.f32 %v1364, %v1476
    %v1503 = vadd.f32 %v1366, %v1478
    %v1504 = vadd.f32 %v1368, %v1480
    %v1505 = vadd.f32 %v1370, %v1482
    %v1506 = vadd.f32 %v1372, %v1484
    %v1507 = vadd.f32 %v1374, %v1486
    %v1508 = vadd.f32 %v1376, %v1488
    %v1509 = vadd.f32 %v1378, %v1490
    %v1510 = vadd.f32 %v1380, %v1492
    %v1511 = vadd.f32 %v1382, %v1494
    %v1512 = vadd.f32 %v1384, %v1496
    %v1513 = vsub.f32 %v1256, %v1497
    %v1514 = vsub.f32 %v1261, %v1498
    %v1515 = vsub.f32 %v1266, %v1499
    %v1516 = vsub.f32 %v1271, %v1500
    %v1517 = vsub.f32 %v1276, %v1501
    %v1518 = vsub.f32 %v1281, %v1502
    %v1519 = vsub.f32 %v1286, %v1503
    %v1520 = vsub.f32 %v1291, %v1504
    %v1521 = vsub.f32 %v1296, %v1505
    %v1522 = vsub.f32 %v1301, %v1506
    %v1523 = vsub.f32 %v1306, %v1507
    %v1524 = vsub.f32 %v1311, %v1508
    %v1525 = vsub.f32 %v1316, %v1509
    %v1526 = vsub.f32 %v1321, %v1510
    %v1527 = vsub.f32 %v1326, %v1511
    %v1528 = vsub.f32 %v1331, %v1512
    %1529 = vst [vmem:[#allocation9] sm:$0xff] %v1513
    %1530 = vst [vmem:[#allocation9 + $0x8] sm:$0xff] %v1514
    %1531 = vst [vmem:[#allocation9 + $0x10] sm:$0xff] %v1515
    %1532 = vst [vmem:[#allocation9 + $0x18] sm:$0xff] %v1516
    %1533 = vst [vmem:[#allocation9 + $0x20] sm:$0xff] %v1517
    %1534 = vst [vmem:[#allocation9 + $0x28] sm:$0xff] %v1518
    %1535 = vst [vmem:[#allocation9 + $0x30] sm:$0xff] %v1519
    %1536 = vst [vmem:[#allocation9 + $0x38] sm:$0xff] %v1520
    %1537 = vst [vmem:[#allocation9 + $0x40] sm:$0xff] %v1521
    %1538 = vst [vmem:[#allocation9 + $0x48] sm:$0xff] %v1522
    %1539 = vst [vmem:[#allocation9 + $0x50] sm:$0xff] %v1523
    %1540 = vst [vmem:[#allocation9 + $0x58] sm:$0xff] %v1524
    %1541 = vst [vmem:[#allocation9 + $0x60] sm:$0xff] %v1525
    %1542 = vst [vmem:[#allocation9 + $0x68] sm:$0xff] %v1526
    %1543 = vst [vmem:[#allocation9 + $0x70] sm:$0xff] %v1527
    %1544 = vst [vmem:[#allocation9 + $0x78] sm:$0xff] %v1528
    // Predicated region
    $region38: #{tpu_custom_call.1} parent=1 // pred_check
      _
    $region39: #{tpu_custom_call.1} parent=1 // pred_check_branch
      %1546 = sbr.rel (0) target = $region41
    $region40: #{tpu_custom_call.1} parent=1 // pred_region
      %s1548 = ssub.s32 2048, 2048
      %1549 = vsyncadd [#allocation6], %s1548
      %s1550 = sshll.u32 [#allocation9], 4
      %s1551 = int_to_ptr.vmem [resolvable:$true] %s1550
      %1556 = dma.vmem_to_hbm [thread:$0]  %s1551, 2048, %s7, [#allocation6], 128, 128, 8
    $region41: #{tpu_custom_call.1} parent=1 // pred_fallthru
      _
    // Predicated region
    $region42: #{tpu_custom_call.1} parent=1 // pred_check
      _
    $region43: #{tpu_custom_call.1} parent=1 // pred_check_branch
      %1558 = sbr.rel (0) target = $region45
    $region44: #{tpu_custom_call.1} parent=1 // pred_region
      %1559 = dma.done [#allocation6], 2048
    $region45: #{tpu_custom_call.1} parent=1 // pred_fallthru
      _
    %1560 = vsyncpa [#allocation5], 1
    %1561 = vsyncpa [#allocation8], 1
    %1562 = vsyncpa [#allocation6], 1

</llo_original>
